<compile_context>
chip_gen: v6e
topology: v6e:2x2x1
jax: 0.10.0
libtpu: 0.0.40
codegen_flags: <defaults>
</compile_context>

<pallas_src>
import jax
import jax.numpy as jnp
from jax import lax
from jax.experimental import pallas as pl
from jax.experimental.pallas import tpu as pltpu

_MAX_BB = 128  # max batch rows per grid step (fills the MXU M dimension)


def _round_up(n, m):
    return ((n + m - 1) // m) * m


def _reorder_gates_rows(a):
    """PyTorch LSTM packs gates [i, f, g, o] along the leading axis.
    Reorder to [i, f, o, g] so all sigmoid gates are one contiguous slice."""
    H = a.shape[0] // 4
    return jnp.concatenate(
        [a[0:H], a[H:2 * H], a[3 * H:4 * H], a[2 * H:3 * H]], axis=0)


def _lstm_layer_kernel(x_ref, wih_ref, whh_ref, b_ref, h0_ref, c0_ref,
                       out_ref, hn_ref, cn_ref, xp_ref):
    # Per-grid-step (one direction, one batch block) shapes:
    #   x_ref  : [L, bb, E]    time-major inputs (shared by both directions)
    #   wih_ref: [E, 4H]       W_ih^T   (gate columns in [i,f,o,g] order)
    #   whh_ref: [H, 4H]       W_hh^T
    #   b_ref  : [1, 4H]       b_ih + b_hh
    #   h0_ref : [bb, H]       initial hidden (this direction)
    #   c0_ref : [bb, H]       initial cell
    #   out_ref: [L, bb, H]    time-major outputs (this direction)
    #   hn_ref : [bb, H]       final hidden
    #   cn_ref : [bb, H]       final cell
    #   xp_ref : [L, bb, 4H]   VMEM scratch (hoisted input projections)
    L, bb, E = x_ref.shape
    H = whh_ref.shape[0]
    G = whh_ref.shape[1]          # 4H
    H3 = 3 * H
    rev = pl.program_id(0) == 1   # grid axis 0 = direction (0 fwd, 1 reverse)

    # Hoisted loop-invariant projection: one MXU matmul for all L timesteps of
    # the whole batch block, instead of one per recurrent step.
    x2 = x_ref[...].reshape(L * bb, E)
    xp = jnp.dot(x2, wih_ref[...], preferred_element_type=jnp.float32) + b_ref[...]
    xp_ref[...] = xp.reshape(L, bb, G)

    whh = whh_ref[...]

    def step(s, carry):
        h, c = carry
        # In-kernel time reversal for the reverse direction.
        t = jnp.where(rev, L - 1 - s, s)
        # Only the recurrent matmul + cell math stay on the serial critical path.
        gates = xp_ref[t] + jnp.dot(h, whh, preferred_element_type=jnp.float32)  # [bb, 4H]
        sg = jax.nn.sigmoid(gates[:, :H3])          # one EUP call for i, f, o
        i_g = sg[:, 0:H]
        f_g = sg[:, H:2 * H]
        o_g = sg[:, 2 * H:H3]
        g_g = jnp.tanh(gates[:, H3:G])
        c_new = f_g * c + i_g * g_g
        h_new = o_g * jnp.tanh(c_new)
        out_ref[t] = h_new                          # direct dynamic row store
        return h_new, c_new

    h_last, c_last = lax.fori_loop(0, L, step, (h0_ref[...], c0_ref[...]),
                                   unroll=True)
    hn_ref[...] = h_last
    cn_ref[...] = c_last


def _lstm_layer_pallas(x_tm, wih_all, whh_all, b_all, h0, c0, *, bb):
    """One LSTM layer, both directions fused.

    x_tm    : [L, Bp, E]   time-major, batch already padded to multiple of bb
    wih_all : [D, E, 4H]   per-direction W_ih^T (gate-permuted)
    whh_all : [D, H, 4H]
    b_all   : [D, 1, 4H]
    h0, c0  : [D, Bp, H]
    Returns (out [D, L, Bp, H] time-major, h_n [D, Bp, H], c_n [D, Bp, H]).
    """
    L, Bp, Ein = x_tm.shape
    D, H, G = whh_all.shape
    assert wih_all.shape == (D, Ein, G)
    assert Bp % bb == 0

    grid = (D, Bp // bb)
    return pl.pallas_call(
        _lstm_layer_kernel,
        out_shape=(jax.ShapeDtypeStruct((D, L, Bp, H), jnp.float32),
                   jax.ShapeDtypeStruct((D, Bp, H), jnp.float32),
                   jax.ShapeDtypeStruct((D, Bp, H), jnp.float32)),
        grid_spec=pltpu.PrefetchScalarGridSpec(
            num_scalar_prefetch=0,
            grid=grid,
            in_specs=[
                pl.BlockSpec((L, bb, Ein), lambda d, b: (0, b, 0)),     # x (shared)
                pl.BlockSpec((None, Ein, G), lambda d, b: (d, 0, 0)),   # W_ih^T
                pl.BlockSpec((None, H, G), lambda d, b: (d, 0, 0)),     # W_hh^T
                pl.BlockSpec((None, 1, G), lambda d, b: (d, 0, 0)),     # bias
                pl.BlockSpec((None, bb, H), lambda d, b: (d, b, 0)),    # h0
                pl.BlockSpec((None, bb, H), lambda d, b: (d, b, 0)),    # c0
            ],
            out_specs=[
                pl.BlockSpec((None, L, bb, H), lambda d, b: (d, 0, b, 0)),  # outputs
                pl.BlockSpec((None, bb, H), lambda d, b: (d, b, 0)),        # h_n
                pl.BlockSpec((None, bb, H), lambda d, b: (d, b, 0)),        # c_n
            ],
            scratch_shapes=[pltpu.VMEM((L, bb, G), jnp.float32)],
        ),
        compiler_params=pltpu.CompilerParams(
            # direction & batch blocks are independent → megacore-shardable (v7x).
            dimension_semantics=("parallel", "parallel")),
    )(x_tm, wih_all, whh_all, b_all, h0, c0)


def pointer_encoder_forward(params, embedded_inputs, hidden, *, n_layers, bidir):
    """Mirrors PointerEncoder.forward: nn.LSTM(batch_first=True) in float32."""
    h0_all, c0_all = hidden
    D = 2 if bidir else 1
    B, L, _ = embedded_inputs.shape

    bb = min(_MAX_BB, _round_up(B, 8))
    Bp = _round_up(B, bb)
    pad = Bp - B

    # Transpose to time-major ONCE; pad batch ONCE; all layers run time-major.
    x_tm = jnp.transpose(embedded_inputs, (1, 0, 2)).astype(jnp.float32)
    h0p = h0_all.astype(jnp.float32)
    c0p = c0_all.astype(jnp.float32)
    if pad:
        x_tm = jnp.pad(x_tm, ((0, 0), (0, pad), (0, 0)))
        h0p = jnp.pad(h0p, ((0, 0), (0, pad), (0, 0)))
        c0p = jnp.pad(c0p, ((0, 0), (0, pad), (0, 0)))

    inp = x_tm
    h_list, c_list = [], []
    for l in range(n_layers):
        wih_s, whh_s, b_s = [], [], []
        for d in range(D):
            sfx = "_reverse" if d == 1 else ""
            wih_s.append(jnp.transpose(_reorder_gates_rows(params[f"w_ih_l{l}{sfx}"])))
            whh_s.append(jnp.transpose(_reorder_gates_rows(params[f"w_hh_l{l}{sfx}"])))
            b_s.append(_reorder_gates_rows(
                params[f"b_ih_l{l}{sfx}"] + params[f"b_hh_l{l}{sfx}"]))
        wih_all = jnp.stack(wih_s, axis=0)            # [D, in, 4H]
        whh_all = jnp.stack(whh_s, axis=0)            # [D, H, 4H]
        b_all = jnp.stack(b_s, axis=0)[:, None, :]    # [D, 1, 4H]

        out_d, hN, cN = _lstm_layer_pallas(
            inp, wih_all, whh_all, b_all,
            h0p[l * D:(l + 1) * D], c0p[l * D:(l + 1) * D], bb=bb)
        h_list.append(hN)
        c_list.append(cN)
        # Next layer consumes the time-major concat directly (no transposes/flips).
        inp = jnp.concatenate([out_d[0], out_d[1]], axis=-1) if D == 2 else out_d[0]
        # TODO(synk): inter-layer dropout skipped (eval semantics).

    out = jnp.transpose(inp, (1, 0, 2))[:B]                    # [B, L, H*D]
    h_n = jnp.concatenate(h_list, axis=0)[:, :B]               # [n_layers*D, B, H]
    c_n = jnp.concatenate(c_list, axis=0)[:, :B]
    return out, (h_n, c_n)


def reference_forward(params, x, hidden, *, n_layers, bidir):
    """Pure-JAX mirror of the PyTorch nn.LSTM forward (original gate order)."""
    h0_all, c0_all = hidden
    D = 2 if bidir else 1
    inp = x
    h_list, c_list = [], []
    for l in range(n_layers):
        dir_outs = []
        for d in range(D):
            sfx = "_reverse" if d == 1 else ""
            w_ih = params[f"w_ih_l{l}{sfx}"]
            w_hh = params[f"w_hh_l{l}{sfx}"]
            b = params[f"b_ih_l{l}{sfx}"] + params[f"b_hh_l{l}{sfx}"]
            H = w_hh.shape[1]
            seq = jnp.flip(inp, axis=1) if d == 1 else inp
            h = h0_all[l * D + d]
            c = c0_all[l * D + d]
            outs = []
            for t in range(seq.shape[1]):
                gates = seq[:, t, :] @ w_ih.T + h @ w_hh.T + b
                i_g = jax.nn.sigmoid(gates[:, 0:H])
                f_g = jax.nn.sigmoid(gates[:, H:2 * H])
                g_g = jnp.tanh(gates[:, 2 * H:3 * H])
                o_g = jax.nn.sigmoid(gates[:, 3 * H:4 * H])
                c = f_g * c + i_g * g_g
                h = o_g * jnp.tanh(c)
                outs.append(h)
            out = jnp.stack(outs, axis=1)
            if d == 1:
                out = jnp.flip(out, axis=1)
            dir_outs.append(out)
            h_list.append(h)
            c_list.append(c)
        inp = jnp.concatenate(dir_outs, axis=-1) if D == 2 else dir_outs[0]
    return inp, (jnp.stack(h_list, axis=0), jnp.stack(c_list, axis=0))


def init_lstm_params(key, input_size, hidden_dim, n_layers, bidir):
    D = 2 if bidir else 1
    H = hidden_dim // 2 if bidir else hidden_dim
    params = {}
    k = key
    for l in range(n_layers):
        in_sz = input_size if l == 0 else H * D
        for d in range(D):
            sfx = "_reverse" if d == 1 else ""
            k, k1, k2, k3, k4 = jax.random.split(k, 5)
            params[f"w_ih_l{l}{sfx}"] = 0.1 * jax.random.normal(k1, (4 * H, in_sz), jnp.float32)
            params[f"w_hh_l{l}{sfx}"] = 0.1 * jax.random.normal(k2, (4 * H, H), jnp.float32)
            params[f"b_ih_l{l}{sfx}"] = 0.1 * jax.random.normal(k3, (4 * H,), jnp.float32)
            params[f"b_hh_l{l}{sfx}"] = 0.1 * jax.random.normal(k4, (4 * H,), jnp.float32)
    return params


def _run_and_check(key, B, L, E, hidden_dim, n_layers, bidir, tag):
    D = 2 if bidir else 1
    H = hidden_dim // 2 if bidir else hidden_dim
    k_par, k_x, k_h, k_c = jax.random.split(key, 4)
    params = init_lstm_params(k_par, E, hidden_dim, n_layers, bidir)
    x = jax.random.normal(k_x, (B, L, E), jnp.float32)
    h0 = 0.1 * jax.random.normal(k_h, (n_layers * D, B, H), jnp.float32)
    c0 = 0.1 * jax.random.normal(k_c, (n_layers * D, B, H), jnp.float32)

    out, (h_n, c_n) = pointer_encoder_forward(params, x, (h0, c0),
                                              n_layers=n_layers, bidir=bidir)
    jax.block_until_ready((out, h_n, c_n))

    ref_out, (ref_h, ref_c) = reference_forward(params, x, (h0, c0),
                                                n_layers=n_layers, bidir=bidir)
    assert out.shape == (B, L, H * D), f"{tag}: bad output shape {out.shape}"
    assert h_n.shape == (n_layers * D, B, H), f"{tag}: bad h_n shape {h_n.shape}"
    assert c_n.shape == (n_layers * D, B, H), f"{tag}: bad c_n shape {c_n.shape}"
    assert jnp.allclose(out, ref_out, atol=1e-4, rtol=1e-4), f"{tag}: outputs mismatch"
    assert jnp.allclose(h_n, ref_h, atol=1e-4, rtol=1e-4), f"{tag}: h_n mismatch"
    assert jnp.allclose(c_n, ref_c, atol=1e-4, rtol=1e-4), f"{tag}: c_n mismatch"


if __name__ == "__main__":
    key = jax.random.PRNGKey(0)
    k1, k2, k3 = jax.random.split(key, 3)

    # Primary config: batch=2, seq=8, embedding_dim=32, hidden_dim=32,
    # n_layers=1, unidirectional.
    _run_and_check(k1, B=2, L=8, E=32, hidden_dim=32, n_layers=1, bidir=False,
                   tag="uni-1layer")

    # Bidirectional, 2 layers, odd batch: exercises the fused-direction grid
    # axis, in-kernel time reversal, batch padding and H = hidden_dim // 2.
    _run_and_check(k2, B=9, L=8, E=32, hidden_dim=32, n_layers=2, bidir=True,
                   tag="bidir-2layer")

    # Larger batch: exercises the 128-row batch block and a multi-block grid.
    _run_and_check(k3, B=130, L=8, E=32, hidden_dim=32, n_layers=1, bidir=False,
                   tag="uni-bigbatch")

    print("KERNEL_OK")
</pallas_src>

<mosaic_0001>
module attributes {stable_mosaic.version = 11 : i64} {
  func.func @_lstm_layer_kernel(%arg0: i32, %arg1: i32, %arg2: memref<8x8x32xf32, #tpu.memory_space<vmem>>, %arg3: memref<1x32x128xf32, #tpu.memory_space<vmem>>, %arg4: memref<1x32x128xf32, #tpu.memory_space<vmem>>, %arg5: memref<1x1x128xf32, #tpu.memory_space<vmem>>, %arg6: memref<1x8x32xf32, #tpu.memory_space<vmem>>, %arg7: memref<1x8x32xf32, #tpu.memory_space<vmem>>, %arg8: memref<1x8x8x32xf32, #tpu.memory_space<vmem>>, %arg9: memref<1x8x32xf32, #tpu.memory_space<vmem>>, %arg10: memref<1x8x32xf32, #tpu.memory_space<vmem>>, %arg11: memref<8x8x128xf32, #tpu.memory_space<vmem>>) attributes {dimension_semantics = [#tpu.dimension_semantics<parallel>, #tpu.dimension_semantics<parallel>], iteration_bounds = array<i64: 1, 1>, scalar_prefetch = 0 : i64, scratch_operands = 1 : i64, tpu.core_type = #tpu.core_type<tc>, window_params = [{transform_indices = @transform_0, window_bounds = array<i64: 8, 8, 32>}, {transform_indices = @transform_1, window_bounds = array<i64: 1, 32, 128>}, {transform_indices = @transform_2, window_bounds = array<i64: 1, 32, 128>}, {transform_indices = @transform_3, window_bounds = array<i64: 1, 1, 128>}, {transform_indices = @transform_4, window_bounds = array<i64: 1, 8, 32>}, {transform_indices = @transform_5, window_bounds = array<i64: 1, 8, 32>}, {transform_indices = @transform_6, window_bounds = array<i64: 1, 8, 8, 32>}, {transform_indices = @transform_7, window_bounds = array<i64: 1, 8, 32>}, {transform_indices = @transform_8, window_bounds = array<i64: 1, 8, 32>}]} {
    %c1_i32 = arith.constant 1 : i32
    %0 = arith.cmpi eq, %arg0, %c1_i32 : i32
    %c0 = arith.constant 0 : index
    %c0_0 = arith.constant 0 : index
    %c0_1 = arith.constant 0 : index
    %1 = vector.load %arg2[%c0, %c0_0, %c0_1] : memref<8x8x32xf32, #tpu.memory_space<vmem>>, vector<8x8x32xf32>
    %2 = vector.shape_cast %1 : vector<8x8x32xf32> to vector<64x32xf32>
    %c0_2 = arith.constant 0 : index
    %c0_3 = arith.constant 0 : index
    %c0_4 = arith.constant 0 : index
    %3 = vector.load %arg3[%c0_2, %c0_3, %c0_4] : memref<1x32x128xf32, #tpu.memory_space<vmem>>, vector<1x32x128xf32>
    %4 = vector.shape_cast %3 : vector<1x32x128xf32> to vector<32x128xf32>
    %cst = arith.constant dense<0.000000e+00> : vector<64x128xf32>
    %5 = tpu.matmul %2, %4, %cst {dimension_numbers = #tpu.dot_dimension_numbers<[1], [0], [0], [1], [0, 0, 1, 1], [], []>} : vector<64x32xf32>, vector<32x128xf32>, vector<64x128xf32> -> vector<64x128xf32>
    %c0_5 = arith.constant 0 : index
    %c0_6 = arith.constant 0 : index
    %c0_7 = arith.constant 0 : index
    %6 = vector.load %arg5[%c0_5, %c0_6, %c0_7] : memref<1x1x128xf32, #tpu.memory_space<vmem>>, vector<1x1x128xf32>
    %7 = vector.shape_cast %6 : vector<1x1x128xf32> to vector<1x128xf32>
    %8 = vector.broadcast %7 : vector<1x128xf32> to vector<64x128xf32>
    %9 = arith.addf %5, %8 : vector<64x128xf32>
    %10 = vector.shape_cast %9 : vector<64x128xf32> to vector<8x8x128xf32>
    %c0_8 = arith.constant 0 : index
    %c0_9 = arith.constant 0 : index
    %c0_10 = arith.constant 0 : index
    %11 = vector.load %arg11[%c0_8, %c0_9, %c0_10] : memref<8x8x128xf32, #tpu.memory_space<vmem>>, vector<8x8x128xf32>
    tpu.vector_store %arg11[%c0_8, %c0_9, %c0_10], %10 {strides = array<i32>} : memref<8x8x128xf32, #tpu.memory_space<vmem>>, vector<8x8x128xf32>,
    %c0_11 = arith.constant 0 : index
    %c0_12 = arith.constant 0 : index
    %c0_13 = arith.constant 0 : index
    %12 = vector.load %arg4[%c0_11, %c0_12, %c0_13] : memref<1x32x128xf32, #tpu.memory_space<vmem>>, vector<1x32x128xf32>
    %13 = vector.shape_cast %12 : vector<1x32x128xf32> to vector<32x128xf32>
    %c0_14 = arith.constant 0 : index
    %c0_15 = arith.constant 0 : index
    %c0_16 = arith.constant 0 : index
    %14 = vector.load %arg6[%c0_14, %c0_15, %c0_16] : memref<1x8x32xf32, #tpu.memory_space<vmem>>, vector<1x8x32xf32>
    %15 = vector.shape_cast %14 : vector<1x8x32xf32> to vector<8x32xf32>
    %c0_17 = arith.constant 0 : index
    %c0_18 = arith.constant 0 : index
    %c0_19 = arith.constant 0 : index
    %16 = vector.load %arg7[%c0_17, %c0_18, %c0_19] : memref<1x8x32xf32, #tpu.memory_space<vmem>>, vector<1x8x32xf32>
    %17 = vector.shape_cast %16 : vector<1x8x32xf32> to vector<8x32xf32>
    %c0_i32 = arith.constant 0 : i32
    %c7_i32 = arith.constant 7 : i32
    %18 = arith.subi %c7_i32, %c0_i32 : i32
    %19 = arith.select %0, %18, %c0_i32 : i32
    %20 = arith.index_cast %19 : i32 to index
    %c0_20 = arith.constant 0 : index
    %c0_21 = arith.constant 0 : index
    %21 = vector.load %arg11[%20, %c0_20, %c0_21] : memref<8x8x128xf32, #tpu.memory_space<vmem>>, vector<1x8x128xf32>
    %22 = vector.shape_cast %21 : vector<1x8x128xf32> to vector<8x128xf32>
    %cst_22 = arith.constant dense<0.000000e+00> : vector<8x128xf32>
    %23 = tpu.matmul %15, %13, %cst_22 {dimension_numbers = #tpu.dot_dimension_numbers<[1], [0], [0], [1], [0, 0, 1, 1], [], []>} : vector<8x32xf32>, vector<32x128xf32>, vector<8x128xf32> -> vector<8x128xf32>
    %24 = arith.addf %22, %23 : vector<8x128xf32>
    %25 = vector.extract_strided_slice %24 {offsets = [0, 0], sizes = [8, 96], strides = [1, 1]} : vector<8x128xf32> to vector<8x96xf32>
    %26 = arith.negf %25 : vector<8x96xf32>
    %27 = math.exp %26 : vector<8x96xf32>
    %cst_23 = arith.constant 1.000000e+00 : f32
    %28 = vector.broadcast %cst_23 : f32 to vector<8x96xf32>
    %29 = arith.addf %28, %27 : vector<8x96xf32>
    %30 = arith.divf %28, %29 : vector<8x96xf32>
    %31 = vector.extract_strided_slice %30 {offsets = [0, 0], sizes = [8, 32], strides = [1, 1]} : vector<8x96xf32> to vector<8x32xf32>
    %32 = vector.extract_strided_slice %30 {offsets = [0, 32], sizes = [8, 32], strides = [1, 1]} : vector<8x96xf32> to vector<8x32xf32>
    %33 = vector.extract_strided_slice %30 {offsets = [0, 64], sizes = [8, 32], strides = [1, 1]} : vector<8x96xf32> to vector<8x32xf32>
    %34 = vector.extract_strided_slice %24 {offsets = [0, 96], sizes = [8, 32], strides = [1, 1]} : vector<8x128xf32> to vector<8x32xf32>
    %35 = math.tanh %34 : vector<8x32xf32>
    %36 = arith.mulf %32, %17 : vector<8x32xf32>
    %37 = arith.mulf %31, %35 : vector<8x32xf32>
    %38 = arith.addf %36, %37 : vector<8x32xf32>
    %39 = math.tanh %38 : vector<8x32xf32>
    %40 = arith.mulf %33, %39 : vector<8x32xf32>
    %c0_24 = arith.constant 0 : index
    %41 = arith.index_cast %19 : i32 to index
    %c0_25 = arith.constant 0 : index
    %c0_26 = arith.constant 0 : index
    %42 = vector.load %arg8[%c0_24, %41, %c0_25, %c0_26] : memref<1x8x8x32xf32, #tpu.memory_space<vmem>>, vector<1x1x8x32xf32>
    %43 = vector.shape_cast %42 : vector<1x1x8x32xf32> to vector<8x32xf32>
    %44 = vector.shape_cast %40 : vector<8x32xf32> to vector<1x1x8x32xf32>
    tpu.vector_store %arg8[%c0_24, %41, %c0_25, %c0_26], %44 {strides = array<i32>} : memref<1x8x8x32xf32, #tpu.memory_space<vmem>>, vector<1x1x8x32xf32>,
    %c1_i32_27 = arith.constant 1 : i32
    %c7_i32_28 = arith.constant 7 : i32
    %45 = arith.subi %c7_i32_28, %c1_i32_27 : i32
    %46 = arith.select %0, %45, %c1_i32_27 : i32
    %47 = arith.index_cast %46 : i32 to index
    %c0_29 = arith.constant 0 : index
    %c0_30 = arith.constant 0 : index
    %48 = vector.load %arg11[%47, %c0_29, %c0_30] : memref<8x8x128xf32, #tpu.memory_space<vmem>>, vector<1x8x128xf32>
    %49 = vector.shape_cast %48 : vector<1x8x128xf32> to vector<8x128xf32>
    %cst_31 = arith.constant dense<0.000000e+00> : vector<8x128xf32>
    %50 = tpu.matmul %40, %13, %cst_31 {dimension_numbers = #tpu.dot_dimension_numbers<[1], [0], [0], [1], [0, 0, 1, 1], [], []>} : vector<8x32xf32>, vector<32x128xf32>, vector<8x128xf32> -> vector<8x128xf32>
    %51 = arith.addf %49, %50 : vector<8x128xf32>
    %52 = vector.extract_strided_slice %51 {offsets = [0, 0], sizes = [8, 96], strides = [1, 1]} : vector<8x128xf32> to vector<8x96xf32>
    %53 = arith.negf %52 : vector<8x96xf32>
    %54 = math.exp %53 : vector<8x96xf32>
    %cst_32 = arith.constant 1.000000e+00 : f32
    %55 = vector.broadcast %cst_32 : f32 to vector<8x96xf32>
    %56 = arith.addf %55, %54 : vector<8x96xf32>
    %57 = arith.divf %55, %56 : vector<8x96xf32>
    %58 = vector.extract_strided_slice %57 {offsets = [0, 0], sizes = [8, 32], strides = [1, 1]} : vector<8x96xf32> to vector<8x32xf32>
    %59 = vector.extract_strided_slice %57 {offsets = [0, 32], sizes = [8, 32], strides = [1, 1]} : vector<8x96xf32> to vector<8x32xf32>
    %60 = vector.extract_strided_slice %57 {offsets = [0, 64], sizes = [8, 32], strides = [1, 1]} : vector<8x96xf32> to vector<8x32xf32>
    %61 = vector.extract_strided_slice %51 {offsets = [0, 96], sizes = [8, 32], strides = [1, 1]} : vector<8x128xf32> to vector<8x32xf32>
    %62 = math.tanh %61 : vector<8x32xf32>
    %63 = arith.mulf %59, %38 : vector<8x32xf32>
    %64 = arith.mulf %58, %62 : vector<8x32xf32>
    %65 = arith.addf %63, %64 : vector<8x32xf32>
    %66 = math.tanh %65 : vector<8x32xf32>
    %67 = arith.mulf %60, %66 : vector<8x32xf32>
    %c0_33 = arith.constant 0 : index
    %68 = arith.index_cast %46 : i32 to index
    %c0_34 = arith.constant 0 : index
    %c0_35 = arith.constant 0 : index
    %69 = vector.load %arg8[%c0_33, %68, %c0_34, %c0_35] : memref<1x8x8x32xf32, #tpu.memory_space<vmem>>, vector<1x1x8x32xf32>
    %70 = vector.shape_cast %69 : vector<1x1x8x32xf32> to vector<8x32xf32>
    %71 = vector.shape_cast %67 : vector<8x32xf32> to vector<1x1x8x32xf32>
    tpu.vector_store %arg8[%c0_33, %68, %c0_34, %c0_35], %71 {strides = array<i32>} : memref<1x8x8x32xf32, #tpu.memory_space<vmem>>, vector<1x1x8x32xf32>,
    %c2_i32 = arith.constant 2 : i32
    %c7_i32_36 = arith.constant 7 : i32
    %72 = arith.subi %c7_i32_36, %c2_i32 : i32
    %73 = arith.select %0, %72, %c2_i32 : i32
    %74 = arith.index_cast %73 : i32 to index
    %c0_37 = arith.constant 0 : index
    %c0_38 = arith.constant 0 : index
    %75 = vector.load %arg11[%74, %c0_37, %c0_38] : memref<8x8x128xf32, #tpu.memory_space<vmem>>, vector<1x8x128xf32>
    %76 = vector.shape_cast %75 : vector<1x8x128xf32> to vector<8x128xf32>
    %cst_39 = arith.constant dense<0.000000e+00> : vector<8x128xf32>
    %77 = tpu.matmul %67, %13, %cst_39 {dimension_numbers = #tpu.dot_dimension_numbers<[1], [0], [0], [1], [0, 0, 1, 1], [], []>} : vector<8x32xf32>, vector<32x128xf32>, vector<8x128xf32> -> vector<8x128xf32>
    %78 = arith.addf %76, %77 : vector<8x128xf32>
    %79 = vector.extract_strided_slice %78 {offsets = [0, 0], sizes = [8, 96], strides = [1, 1]} : vector<8x128xf32> to vector<8x96xf32>
    %80 = arith.negf %79 : vector<8x96xf32>
    %81 = math.exp %80 : vector<8x96xf32>
    %cst_40 = arith.constant 1.000000e+00 : f32
    %82 = vector.broadcast %cst_40 : f32 to vector<8x96xf32>
    %83 = arith.addf %82, %81 : vector<8x96xf32>
    %84 = arith.divf %82, %83 : vector<8x96xf32>
    %85 = vector.extract_strided_slice %84 {offsets = [0, 0], sizes = [8, 32], strides = [1, 1]} : vector<8x96xf32> to vector<8x32xf32>
    %86 = vector.extract_strided_slice %84 {offsets = [0, 32], sizes = [8, 32], strides = [1, 1]} : vector<8x96xf32> to vector<8x32xf32>
    %87 = vector.extract_strided_slice %84 {offsets = [0, 64], sizes = [8, 32], strides = [1, 1]} : vector<8x96xf32> to vector<8x32xf32>
    %88 = vector.extract_strided_slice %78 {offsets = [0, 96], sizes = [8, 32], strides = [1, 1]} : vector<8x128xf32> to vector<8x32xf32>
    %89 = math.tanh %88 : vector<8x32xf32>
    %90 = arith.mulf %86, %65 : vector<8x32xf32>
    %91 = arith.mulf %85, %89 : vector<8x32xf32>
    %92 = arith.addf %90, %91 : vector<8x32xf32>
    %93 = math.tanh %92 : vector<8x32xf32>
    %94 = arith.mulf %87, %93 : vector<8x32xf32>
    %c0_41 = arith.constant 0 : index
    %95 = arith.index_cast %73 : i32 to index
    %c0_42 = arith.constant 0 : index
    %c0_43 = arith.constant 0 : index
    %96 = vector.load %arg8[%c0_41, %95, %c0_42, %c0_43] : memref<1x8x8x32xf32, #tpu.memory_space<vmem>>, vector<1x1x8x32xf32>
    %97 = vector.shape_cast %96 : vector<1x1x8x32xf32> to vector<8x32xf32>
    %98 = vector.shape_cast %94 : vector<8x32xf32> to vector<1x1x8x32xf32>
    tpu.vector_store %arg8[%c0_41, %95, %c0_42, %c0_43], %98 {strides = array<i32>} : memref<1x8x8x32xf32, #tpu.memory_space<vmem>>, vector<1x1x8x32xf32>,
    %c3_i32 = arith.constant 3 : i32
    %c7_i32_44 = arith.constant 7 : i32
    %99 = arith.subi %c7_i32_44, %c3_i32 : i32
    %100 = arith.select %0, %99, %c3_i32 : i32
    %101 = arith.index_cast %100 : i32 to index
    %c0_45 = arith.constant 0 : index
    %c0_46 = arith.constant 0 : index
    %102 = vector.load %arg11[%101, %c0_45, %c0_46] : memref<8x8x128xf32, #tpu.memory_space<vmem>>, vector<1x8x128xf32>
    %103 = vector.shape_cast %102 : vector<1x8x128xf32> to vector<8x128xf32>
    %cst_47 = arith.constant dense<0.000000e+00> : vector<8x128xf32>
    %104 = tpu.matmul %94, %13, %cst_47 {dimension_numbers = #tpu.dot_dimension_numbers<[1], [0], [0], [1], [0, 0, 1, 1], [], []>} : vector<8x32xf32>, vector<32x128xf32>, vector<8x128xf32> -> vector<8x128xf32>
    %105 = arith.addf %103, %104 : vector<8x128xf32>
    %106 = vector.extract_strided_slice %105 {offsets = [0, 0], sizes = [8, 96], strides = [1, 1]} : vector<8x128xf32> to vector<8x96xf32>
    %107 = arith.negf %106 : vector<8x96xf32>
    %108 = math.exp %107 : vector<8x96xf32>
    %cst_48 = arith.constant 1.000000e+00 : f32
    %109 = vector.broadcast %cst_48 : f32 to vector<8x96xf32>
    %110 = arith.addf %109, %108 : vector<8x96xf32>
    %111 = arith.divf %109, %110 : vector<8x96xf32>
    %112 = vector.extract_strided_slice %111 {offsets = [0, 0], sizes = [8, 32], strides = [1, 1]} : vector<8x96xf32> to vector<8x32xf32>
    %113 = vector.extract_strided_slice %111 {offsets = [0, 32], sizes = [8, 32], strides = [1, 1]} : vector<8x96xf32> to vector<8x32xf32>
    %114 = vector.extract_strided_slice %111 {offsets = [0, 64], sizes = [8, 32], strides = [1, 1]} : vector<8x96xf32> to vector<8x32xf32>
    %115 = vector.extract_strided_slice %105 {offsets = [0, 96], sizes = [8, 32], strides = [1, 1]} : vector<8x128xf32> to vector<8x32xf32>
    %116 = math.tanh %115 : vector<8x32xf32>
    %117 = arith.mulf %113, %92 : vector<8x32xf32>
    %118 = arith.mulf %112, %116 : vector<8x32xf32>
    %119 = arith.addf %117, %118 : vector<8x32xf32>
    %120 = math.tanh %119 : vector<8x32xf32>
    %121 = arith.mulf %114, %120 : vector<8x32xf32>
    %c0_49 = arith.constant 0 : index
    %122 = arith.index_cast %100 : i32 to index
    %c0_50 = arith.constant 0 : index
    %c0_51 = arith.constant 0 : index
    %123 = vector.load %arg8[%c0_49, %122, %c0_50, %c0_51] : memref<1x8x8x32xf32, #tpu.memory_space<vmem>>, vector<1x1x8x32xf32>
    %124 = vector.shape_cast %123 : vector<1x1x8x32xf32> to vector<8x32xf32>
    %125 = vector.shape_cast %121 : vector<8x32xf32> to vector<1x1x8x32xf32>
    tpu.vector_store %arg8[%c0_49, %122, %c0_50, %c0_51], %125 {strides = array<i32>} : memref<1x8x8x32xf32, #tpu.memory_space<vmem>>, vector<1x1x8x32xf32>,
    %c4_i32 = arith.constant 4 : i32
    %c7_i32_52 = arith.constant 7 : i32
    %126 = arith.subi %c7_i32_52, %c4_i32 : i32
    %127 = arith.select %0, %126, %c4_i32 : i32
    %128 = arith.index_cast %127 : i32 to index
    %c0_53 = arith.constant 0 : index
    %c0_54 = arith.constant 0 : index
    %129 = vector.load %arg11[%128, %c0_53, %c0_54] : memref<8x8x128xf32, #tpu.memory_space<vmem>>, vector<1x8x128xf32>
    %130 = vector.shape_cast %129 : vector<1x8x128xf32> to vector<8x128xf32>
    %cst_55 = arith.constant dense<0.000000e+00> : vector<8x128xf32>
    %131 = tpu.matmul %121, %13, %cst_55 {dimension_numbers = #tpu.dot_dimension_numbers<[1], [0], [0], [1], [0, 0, 1, 1], [], []>} : vector<8x32xf32>, vector<32x128xf32>, vector<8x128xf32> -> vector<8x128xf32>
    %132 = arith.addf %130, %131 : vector<8x128xf32>
    %133 = vector.extract_strided_slice %132 {offsets = [0, 0], sizes = [8, 96], strides = [1, 1]} : vector<8x128xf32> to vector<8x96xf32>
    %134 = arith.negf %133 : vector<8x96xf32>
    %135 = math.exp %134 : vector<8x96xf32>
    %cst_56 = arith.constant 1.000000e+00 : f32
    %136 = vector.broadcast %cst_56 : f32 to vector<8x96xf32>
    %137 = arith.addf %136, %135 : vector<8x96xf32>
    %138 = arith.divf %136, %137 : vector<8x96xf32>
    %139 = vector.extract_strided_slice %138 {offsets = [0, 0], sizes = [8, 32], strides = [1, 1]} : vector<8x96xf32> to vector<8x32xf32>
    %140 = vector.extract_strided_slice %138 {offsets = [0, 32], sizes = [8, 32], strides = [1, 1]} : vector<8x96xf32> to vector<8x32xf32>
    %141 = vector.extract_strided_slice %138 {offsets = [0, 64], sizes = [8, 32], strides = [1, 1]} : vector<8x96xf32> to vector<8x32xf32>
    %142 = vector.extract_strided_slice %132 {offsets = [0, 96], sizes = [8, 32], strides = [1, 1]} : vector<8x128xf32> to vector<8x32xf32>
    %143 = math.tanh %142 : vector<8x32xf32>
    %144 = arith.mulf %140, %119 : vector<8x32xf32>
    %145 = arith.mulf %139, %143 : vector<8x32xf32>
    %146 = arith.addf %144, %145 : vector<8x32xf32>
    %147 = math.tanh %146 : vector<8x32xf32>
    %148 = arith.mulf %141, %147 : vector<8x32xf32>
    %c0_57 = arith.constant 0 : index
    %149 = arith.index_cast %127 : i32 to index
    %c0_58 = arith.constant 0 : index
    %c0_59 = arith.constant 0 : index
    %150 = vector.load %arg8[%c0_57, %149, %c0_58, %c0_59] : memref<1x8x8x32xf32, #tpu.memory_space<vmem>>, vector<1x1x8x32xf32>
    %151 = vector.shape_cast %150 : vector<1x1x8x32xf32> to vector<8x32xf32>
    %152 = vector.shape_cast %148 : vector<8x32xf32> to vector<1x1x8x32xf32>
    tpu.vector_store %arg8[%c0_57, %149, %c0_58, %c0_59], %152 {strides = array<i32>} : memref<1x8x8x32xf32, #tpu.memory_space<vmem>>, vector<1x1x8x32xf32>,
    %c5_i32 = arith.constant 5 : i32
    %c7_i32_60 = arith.constant 7 : i32
    %153 = arith.subi %c7_i32_60, %c5_i32 : i32
    %154 = arith.select %0, %153, %c5_i32 : i32
    %155 = arith.index_cast %154 : i32 to index
    %c0_61 = arith.constant 0 : index
    %c0_62 = arith.constant 0 : index
    %156 = vector.load %arg11[%155, %c0_61, %c0_62] : memref<8x8x128xf32, #tpu.memory_space<vmem>>, vector<1x8x128xf32>
    %157 = vector.shape_cast %156 : vector<1x8x128xf32> to vector<8x128xf32>
    %cst_63 = arith.constant dense<0.000000e+00> : vector<8x128xf32>
    %158 = tpu.matmul %148, %13, %cst_63 {dimension_numbers = #tpu.dot_dimension_numbers<[1], [0], [0], [1], [0, 0, 1, 1], [], []>} : vector<8x32xf32>, vector<32x128xf32>, vector<8x128xf32> -> vector<8x128xf32>
    %159 = arith.addf %157, %158 : vector<8x128xf32>
    %160 = vector.extract_strided_slice %159 {offsets = [0, 0], sizes = [8, 96], strides = [1, 1]} : vector<8x128xf32> to vector<8x96xf32>
    %161 = arith.negf %160 : vector<8x96xf32>
    %162 = math.exp %161 : vector<8x96xf32>
    %cst_64 = arith.constant 1.000000e+00 : f32
    %163 = vector.broadcast %cst_64 : f32 to vector<8x96xf32>
    %164 = arith.addf %163, %162 : vector<8x96xf32>
    %165 = arith.divf %163, %164 : vector<8x96xf32>
    %166 = vector.extract_strided_slice %165 {offsets = [0, 0], sizes = [8, 32], strides = [1, 1]} : vector<8x96xf32> to vector<8x32xf32>
    %167 = vector.extract_strided_slice %165 {offsets = [0, 32], sizes = [8, 32], strides = [1, 1]} : vector<8x96xf32> to vector<8x32xf32>
    %168 = vector.extract_strided_slice %165 {offsets = [0, 64], sizes = [8, 32], strides = [1, 1]} : vector<8x96xf32> to vector<8x32xf32>
    %169 = vector.extract_strided_slice %159 {offsets = [0, 96], sizes = [8, 32], strides = [1, 1]} : vector<8x128xf32> to vector<8x32xf32>
    %170 = math.tanh %169 : vector<8x32xf32>
    %171 = arith.mulf %167, %146 : vector<8x32xf32>
    %172 = arith.mulf %166, %170 : vector<8x32xf32>
    %173 = arith.addf %171, %172 : vector<8x32xf32>
    %174 = math.tanh %173 : vector<8x32xf32>
    %175 = arith.mulf %168, %174 : vector<8x32xf32>
    %c0_65 = arith.constant 0 : index
    %176 = arith.index_cast %154 : i32 to index
    %c0_66 = arith.constant 0 : index
    %c0_67 = arith.constant 0 : index
    %177 = vector.load %arg8[%c0_65, %176, %c0_66, %c0_67] : memref<1x8x8x32xf32, #tpu.memory_space<vmem>>, vector<1x1x8x32xf32>
    %178 = vector.shape_cast %177 : vector<1x1x8x32xf32> to vector<8x32xf32>
    %179 = vector.shape_cast %175 : vector<8x32xf32> to vector<1x1x8x32xf32>
    tpu.vector_store %arg8[%c0_65, %176, %c0_66, %c0_67], %179 {strides = array<i32>} : memref<1x8x8x32xf32, #tpu.memory_space<vmem>>, vector<1x1x8x32xf32>,
    %c6_i32 = arith.constant 6 : i32
    %c7_i32_68 = arith.constant 7 : i32
    %180 = arith.subi %c7_i32_68, %c6_i32 : i32
    %181 = arith.select %0, %180, %c6_i32 : i32
    %182 = arith.index_cast %181 : i32 to index
    %c0_69 = arith.constant 0 : index
    %c0_70 = arith.constant 0 : index
    %183 = vector.load %arg11[%182, %c0_69, %c0_70] : memref<8x8x128xf32, #tpu.memory_space<vmem>>, vector<1x8x128xf32>
    %184 = vector.shape_cast %183 : vector<1x8x128xf32> to vector<8x128xf32>
    %cst_71 = arith.constant dense<0.000000e+00> : vector<8x128xf32>
    %185 = tpu.matmul %175, %13, %cst_71 {dimension_numbers = #tpu.dot_dimension_numbers<[1], [0], [0], [1], [0, 0, 1, 1], [], []>} : vector<8x32xf32>, vector<32x128xf32>, vector<8x128xf32> -> vector<8x128xf32>
    %186 = arith.addf %184, %185 : vector<8x128xf32>
    %187 = vector.extract_strided_slice %186 {offsets = [0, 0], sizes = [8, 96], strides = [1, 1]} : vector<8x128xf32> to vector<8x96xf32>
    %188 = arith.negf %187 : vector<8x96xf32>
    %189 = math.exp %188 : vector<8x96xf32>
    %cst_72 = arith.constant 1.000000e+00 : f32
    %190 = vector.broadcast %cst_72 : f32 to vector<8x96xf32>
    %191 = arith.addf %190, %189 : vector<8x96xf32>
    %192 = arith.divf %190, %191 : vector<8x96xf32>
    %193 = vector.extract_strided_slice %192 {offsets = [0, 0], sizes = [8, 32], strides = [1, 1]} : vector<8x96xf32> to vector<8x32xf32>
    %194 = vector.extract_strided_slice %192 {offsets = [0, 32], sizes = [8, 32], strides = [1, 1]} : vector<8x96xf32> to vector<8x32xf32>
    %195 = vector.extract_strided_slice %192 {offsets = [0, 64], sizes = [8, 32], strides = [1, 1]} : vector<8x96xf32> to vector<8x32xf32>
    %196 = vector.extract_strided_slice %186 {offsets = [0, 96], sizes = [8, 32], strides = [1, 1]} : vector<8x128xf32> to vector<8x32xf32>
    %197 = math.tanh %196 : vector<8x32xf32>
    %198 = arith.mulf %194, %173 : vector<8x32xf32>
    %199 = arith.mulf %193, %197 : vector<8x32xf32>
    %200 = arith.addf %198, %199 : vector<8x32xf32>
    %201 = math.tanh %200 : vector<8x32xf32>
    %202 = arith.mulf %195, %201 : vector<8x32xf32>
    %c0_73 = arith.constant 0 : index
    %203 = arith.index_cast %181 : i32 to index
    %c0_74 = arith.constant 0 : index
    %c0_75 = arith.constant 0 : index
    %204 = vector.load %arg8[%c0_73, %203, %c0_74, %c0_75] : memref<1x8x8x32xf32, #tpu.memory_space<vmem>>, vector<1x1x8x32xf32>
    %205 = vector.shape_cast %204 : vector<1x1x8x32xf32> to vector<8x32xf32>
    %206 = vector.shape_cast %202 : vector<8x32xf32> to vector<1x1x8x32xf32>
    tpu.vector_store %arg8[%c0_73, %203, %c0_74, %c0_75], %206 {strides = array<i32>} : memref<1x8x8x32xf32, #tpu.memory_space<vmem>>, vector<1x1x8x32xf32>,
    %c7_i32_76 = arith.constant 7 : i32
    %c7_i32_77 = arith.constant 7 : i32
    %207 = arith.subi %c7_i32_77, %c7_i32_76 : i32
    %208 = arith.select %0, %207, %c7_i32_76 : i32
    %209 = arith.index_cast %208 : i32 to index
    %c0_78 = arith.constant 0 : index
    %c0_79 = arith.constant 0 : index
    %210 = vector.load %arg11[%209, %c0_78, %c0_79] : memref<8x8x128xf32, #tpu.memory_space<vmem>>, vector<1x8x128xf32>
    %211 = vector.shape_cast %210 : vector<1x8x128xf32> to vector<8x128xf32>
    %cst_80 = arith.constant dense<0.000000e+00> : vector<8x128xf32>
    %212 = tpu.matmul %202, %13, %cst_80 {dimension_numbers = #tpu.dot_dimension_numbers<[1], [0], [0], [1], [0, 0, 1, 1], [], []>} : vector<8x32xf32>, vector<32x128xf32>, vector<8x128xf32> -> vector<8x128xf32>
    %213 = arith.addf %211, %212 : vector<8x128xf32>
    %214 = vector.extract_strided_slice %213 {offsets = [0, 0], sizes = [8, 96], strides = [1, 1]} : vector<8x128xf32> to vector<8x96xf32>
    %215 = arith.negf %214 : vector<8x96xf32>
    %216 = math.exp %215 : vector<8x96xf32>
    %cst_81 = arith.constant 1.000000e+00 : f32
    %217 = vector.broadcast %cst_81 : f32 to vector<8x96xf32>
    %218 = arith.addf %217, %216 : vector<8x96xf32>
    %219 = arith.divf %217, %218 : vector<8x96xf32>
    %220 = vector.extract_strided_slice %219 {offsets = [0, 0], sizes = [8, 32], strides = [1, 1]} : vector<8x96xf32> to vector<8x32xf32>
    %221 = vector.extract_strided_slice %219 {offsets = [0, 32], sizes = [8, 32], strides = [1, 1]} : vector<8x96xf32> to vector<8x32xf32>
    %222 = vector.extract_strided_slice %219 {offsets = [0, 64], sizes = [8, 32], strides = [1, 1]} : vector<8x96xf32> to vector<8x32xf32>
    %223 = vector.extract_strided_slice %213 {offsets = [0, 96], sizes = [8, 32], strides = [1, 1]} : vector<8x128xf32> to vector<8x32xf32>
    %224 = math.tanh %223 : vector<8x32xf32>
    %225 = arith.mulf %221, %200 : vector<8x32xf32>
    %226 = arith.mulf %220, %224 : vector<8x32xf32>
    %227 = arith.addf %225, %226 : vector<8x32xf32>
    %228 = math.tanh %227 : vector<8x32xf32>
    %229 = arith.mulf %222, %228 : vector<8x32xf32>
    %c0_82 = arith.constant 0 : index
    %230 = arith.index_cast %208 : i32 to index
    %c0_83 = arith.constant 0 : index
    %c0_84 = arith.constant 0 : index
    %231 = vector.load %arg8[%c0_82, %230, %c0_83, %c0_84] : memref<1x8x8x32xf32, #tpu.memory_space<vmem>>, vector<1x1x8x32xf32>
    %232 = vector.shape_cast %231 : vector<1x1x8x32xf32> to vector<8x32xf32>
    %233 = vector.shape_cast %229 : vector<8x32xf32> to vector<1x1x8x32xf32>
    tpu.vector_store %arg8[%c0_82, %230, %c0_83, %c0_84], %233 {strides = array<i32>} : memref<1x8x8x32xf32, #tpu.memory_space<vmem>>, vector<1x1x8x32xf32>,
    %c8_i32 = arith.constant 8 : i32
    %c0_85 = arith.constant 0 : index
    %c0_86 = arith.constant 0 : index
    %c0_87 = arith.constant 0 : index
    %234 = vector.load %arg9[%c0_85, %c0_86, %c0_87] : memref<1x8x32xf32, #tpu.memory_space<vmem>>, vector<1x8x32xf32>
    %235 = vector.shape_cast %234 : vector<1x8x32xf32> to vector<8x32xf32>
    %236 = vector.shape_cast %229 : vector<8x32xf32> to vector<1x8x32xf32>
    tpu.vector_store %arg9[%c0_85, %c0_86, %c0_87], %236 {strides = array<i32>} : memref<1x8x32xf32, #tpu.memory_space<vmem>>, vector<1x8x32xf32>,
    %c0_88 = arith.constant 0 : index
    %c0_89 = arith.constant 0 : index
    %c0_90 = arith.constant 0 : index
    %237 = vector.load %arg10[%c0_88, %c0_89, %c0_90] : memref<1x8x32xf32, #tpu.memory_space<vmem>>, vector<1x8x32xf32>
    %238 = vector.shape_cast %237 : vector<1x8x32xf32> to vector<8x32xf32>
    %239 = vector.shape_cast %227 : vector<8x32xf32> to vector<1x8x32xf32>
    tpu.vector_store %arg10[%c0_88, %c0_89, %c0_90], %239 {strides = array<i32>} : memref<1x8x32xf32, #tpu.memory_space<vmem>>, vector<1x8x32xf32>,
    return
  }
  func.func @transform_0(%arg0: i32, %arg1: i32) -> (i32, i32, i32) {
    %c0_i32 = arith.constant 0 : i32
    %c0_i32_0 = arith.constant 0 : i32
    %c0_i32_1 = arith.constant 0 : i32
    return %c0_i32, %arg1, %c0_i32_0 : i32, i32, i32
  }
  func.func @transform_1(%arg0: i32, %arg1: i32) -> (i32, i32, i32) {
    %c0_i32 = arith.constant 0 : i32
    %c0_i32_0 = arith.constant 0 : i32
    %c0_i32_1 = arith.constant 0 : i32
    return %arg0, %c0_i32, %c0_i32_0 : i32, i32, i32
  }
  func.func @transform_2(%arg0: i32, %arg1: i32) -> (i32, i32, i32) {
    %c0_i32 = arith.constant 0 : i32
    %c0_i32_0 = arith.constant 0 : i32
    %c0_i32_1 = arith.constant 0 : i32
    return %arg0, %c0_i32, %c0_i32_0 : i32, i32, i32
  }
  func.func @transform_3(%arg0: i32, %arg1: i32) -> (i32, i32, i32) {
    %c0_i32 = arith.constant 0 : i32
    %c0_i32_0 = arith.constant 0 : i32
    %c0_i32_1 = arith.constant 0 : i32
    return %arg0, %c0_i32, %c0_i32_0 : i32, i32, i32
  }
  func.func @transform_4(%arg0: i32, %arg1: i32) -> (i32, i32, i32) {
    %c0_i32 = arith.constant 0 : i32
    %c0_i32_0 = arith.constant 0 : i32
    return %arg0, %arg1, %c0_i32 : i32, i32, i32
  }
  func.func @transform_5(%arg0: i32, %arg1: i32) -> (i32, i32, i32) {
    %c0_i32 = arith.constant 0 : i32
    %c0_i32_0 = arith.constant 0 : i32
    return %arg0, %arg1, %c0_i32 : i32, i32, i32
  }
  func.func @transform_6(%arg0: i32, %arg1: i32) -> (i32, i32, i32, i32) {
    %c0_i32 = arith.constant 0 : i32
    %c0_i32_0 = arith.constant 0 : i32
    %c0_i32_1 = arith.constant 0 : i32
    return %arg0, %c0_i32, %arg1, %c0_i32_0 : i32, i32, i32, i32
  }
  func.func @transform_7(%arg0: i32, %arg1: i32) -> (i32, i32, i32) {
    %c0_i32 = arith.constant 0 : i32
    %c0_i32_0 = arith.constant 0 : i32
    return %arg0, %arg1, %c0_i32 : i32, i32, i32
  }
  func.func @transform_8(%arg0: i32, %arg1: i32) -> (i32, i32, i32) {
    %c0_i32 = arith.constant 0 : i32
    %c0_i32_0 = arith.constant 0 : i32
    return %arg0, %arg1, %c0_i32 : i32, i32, i32
  }
}

</mosaic_0001>

<llo_original>
// kernel: tpu_custom_call.1
$region0: #{tpu_custom_call.1}
  #allocation0 [shape = 'u32[]', space=smem, size = 0x4, offset = 0x4, fixed_abs, tag = 'smem constant byte address 0x4 - core index']
  #allocation1 [shape = 'u32[144,128]{1,0:T(1,128)}', space=vmem, size = 0x12000, scoped, tag = 'internal scratch']
  #allocation2 [shape = 'f32[8,8,128]{2,1,0:T(8,128)}', space=vmem, size = 0x8000, scoped, tag = 'scratch operand']
  %s0 = inlined_call_operand.hbm [shape: f32[8,8,32], index: 0, kind: input, shape index: {}]
  %s1 = inlined_call_operand.hbm [shape: f32[1,32,128], index: 1, kind: input, shape index: {}]
  %s2 = inlined_call_operand.hbm [shape: f32[1,32,128], index: 2, kind: input, shape index: {}]
  %s3 = inlined_call_operand.vmem [shape: f32[1,1,128], index: 3, kind: input, shape index: {}]
  %s4 = inlined_call_operand.hbm [shape: f32[1,8,32], index: 4, kind: input, shape index: {}]
  %s5 = inlined_call_operand.vmem [shape: f32[1,8,32], index: 5, kind: input, shape index: {}]
  %s6 = inlined_call_operand.hbm [shape: f32[1,8,8,32], index: 6, kind: output, shape index: {0}]
  %s7 = inlined_call_operand.hbm [shape: f32[1,8,32], index: 7, kind: output, shape index: {1}]
  %s8 = inlined_call_operand.hbm [shape: f32[1,8,32], index: 8, kind: output, shape index: {2}]
  %9 = xla_tuple %s6, %s7, %s8
  %s10 = sld [smem:[#allocation0]]
  $region66: #{tpu_custom_call.1} parent=0
    _
  %s12 = ssub.s32 1, %s10
  %s13 = scalar_select 0, %s12, %s10
  $region1: #{tpu_custom_call.1} parent=0
    #allocation3 [shape = 'u8[32768]{0}', space=vmem, size = 0x8000, scoped, tag = 'input window, operand 0, single buffered']
    #allocation4 [shape = 's32[1]{0}', space=sflag, size = 0x4, scoped, tag = 'scoped memory for tpu_custom_call.1']
    #allocation5 [shape = 's32[1]{0}', space=sflag, size = 0x4, scoped, tag = 'scoped memory for tpu_custom_call.1']
    #allocation6 [shape = 'u8[16384]{0}', space=vmem, size = 0x4000, scoped, tag = 'input window, operand 1, single buffered']
    #allocation7 [shape = 's32[1]{0}', space=sflag, size = 0x4, scoped, tag = 'scoped memory for tpu_custom_call.1']
    #allocation8 [shape = 'u8[16384]{0}', space=vmem, size = 0x4000, scoped, tag = 'input window, operand 2, single buffered']
    #allocation9 [shape = 'u8[4096]{0}', space=vmem, size = 0x1000, scoped, tag = 'input window, operand 4, single buffered']
    #allocation10 [shape = 's32[1]{0}', space=sflag, size = 0x4, scoped, tag = 'scoped memory for tpu_custom_call.1']
    #allocation11 [shape = 'u8[32768]{0}', space=vmem, size = 0x8000, scoped, tag = 'output window, operand 0, single buffered']
    #allocation12 [shape = 'u8[4096]{0}', space=vmem, size = 0x1000, scoped, tag = 'output window, operand 1, single buffered']
    #allocation13 [shape = 's32[1]{0}', space=sflag, size = 0x4, scoped, tag = 'scoped memory for tpu_custom_call.1']
    #allocation14 [shape = 'u8[4096]{0}', space=vmem, size = 0x1000, scoped, tag = 'output window, operand 2, single buffered']
    %14 = vsyncpa [#allocation4], 0
    %15 = vsyncpa [#allocation7], 0
    %16 = vsyncpa [#allocation10], 0
    %17 = vsyncpa [#allocation5], 0
    %18 = vsyncpa [#allocation13], 0
    // Predicated region
    $region2: #{tpu_custom_call.1} parent=1 // pred_check
      _
    $region3: #{tpu_custom_call.1} parent=1 // pred_check_branch
      %20 = sbr.rel (0) target = $region5
    $region4: #{tpu_custom_call.1} parent=1 // pred_region
      %s22 = ssub.s32 1024, 1024
      %23 = vsyncadd [#allocation4], %s22
      %s24 = sshll.u32 [#allocation3], 4
      %s25 = int_to_ptr.vmem [resolvable:$true] %s24
      %30 = dma.hbm_to_vmem [thread:$0]  %s0, 1024, %s25, [#allocation4], 128, 128, 8
    $region5: #{tpu_custom_call.1} parent=1 // pred_fallthru
      _
    // Predicated region
    $region6: #{tpu_custom_call.1} parent=1 // pred_check
      _
    $region7: #{tpu_custom_call.1} parent=1 // pred_check_branch
      %32 = sbr.rel (0) target = $region9
    $region8: #{tpu_custom_call.1} parent=1 // pred_region
      %s34 = ssub.s32 512, 512
      %35 = vsyncadd [#allocation7], %s34
      %s36 = sshll.u32 [#allocation6], 4
      %s37 = int_to_ptr.vmem [resolvable:$true] %s36
      %42 = dma.hbm_to_vmem [thread:$0]  %s1, 512, %s37, [#allocation7], 128, 128, 8
    $region9: #{tpu_custom_call.1} parent=1 // pred_fallthru
      _
    // Predicated region
    $region10: #{tpu_custom_call.1} parent=1 // pred_check
      _
    $region11: #{tpu_custom_call.1} parent=1 // pred_check_branch
      %44 = sbr.rel (0) target = $region13
    $region12: #{tpu_custom_call.1} parent=1 // pred_region
      %s46 = ssub.s32 512, 512
      %47 = vsyncadd [#allocation7], %s46
      %s48 = sshll.u32 [#allocation8], 4
      %s49 = int_to_ptr.vmem [resolvable:$true] %s48
      %54 = dma.hbm_to_vmem [thread:$0]  %s2, 512, %s49, [#allocation7], 128, 128, 8
    $region13: #{tpu_custom_call.1} parent=1 // pred_fallthru
      _
    // Predicated region
    $region14: #{tpu_custom_call.1} parent=1 // pred_check
      _
    $region15: #{tpu_custom_call.1} parent=1 // pred_check_branch
      %56 = sbr.rel (0) target = $region17
    $region16: #{tpu_custom_call.1} parent=1 // pred_region
      _
    $region17: #{tpu_custom_call.1} parent=1 // pred_fallthru
      _
    // Predicated region
    $region18: #{tpu_custom_call.1} parent=1 // pred_check
      _
    $region19: #{tpu_custom_call.1} parent=1 // pred_check_branch
      %58 = sbr.rel (0) target = $region21
    $region20: #{tpu_custom_call.1} parent=1 // pred_region
      %s60 = ssub.s32 128, 128
      %61 = vsyncadd [#allocation10], %s60
      %s63 = sshll.u32 [#allocation9], 4
      %s64 = int_to_ptr.vmem [resolvable:$true] %s63
      %66 = dma.hbm_to_vmem [thread:$0]  %s4, 128, %s64, [#allocation10]
    $region21: #{tpu_custom_call.1} parent=1 // pred_fallthru
      _
    // Predicated region
    $region22: #{tpu_custom_call.1} parent=1 // pred_check
      _
    $region23: #{tpu_custom_call.1} parent=1 // pred_check_branch
      %68 = sbr.rel (0) target = $region25
    $region24: #{tpu_custom_call.1} parent=1 // pred_region
      _
    $region25: #{tpu_custom_call.1} parent=1 // pred_fallthru
      _
    // Predicated region
    $region26: #{tpu_custom_call.1} parent=1 // pred_check
      _
    $region27: #{tpu_custom_call.1} parent=1 // pred_check_branch
      %70 = sbr.rel (0) target = $region29
    $region28: #{tpu_custom_call.1} parent=1 // pred_region
      %71 = dma.done [#allocation4], 1024
    $region29: #{tpu_custom_call.1} parent=1 // pred_fallthru
      _
    // Predicated region
    $region30: #{tpu_custom_call.1} parent=1 // pred_check
      _
    $region31: #{tpu_custom_call.1} parent=1 // pred_check_branch
      %73 = sbr.rel (0) target = $region33
    $region32: #{tpu_custom_call.1} parent=1 // pred_region
      %74 = dma.done [#allocation7], 512
    $region33: #{tpu_custom_call.1} parent=1 // pred_fallthru
      _
    // Predicated region
    $region34: #{tpu_custom_call.1} parent=1 // pred_check
      _
    $region35: #{tpu_custom_call.1} parent=1 // pred_check_branch
      %76 = sbr.rel (0) target = $region37
    $region36: #{tpu_custom_call.1} parent=1 // pred_region
      %77 = dma.done [#allocation7], 512
    $region37: #{tpu_custom_call.1} parent=1 // pred_fallthru
      _
    // Predicated region
    $region38: #{tpu_custom_call.1} parent=1 // pred_check
      _
    $region39: #{tpu_custom_call.1} parent=1 // pred_check_branch
      %79 = sbr.rel (0) target = $region41
    $region40: #{tpu_custom_call.1} parent=1 // pred_region
      %80 = dma.done [#allocation10], 128
    $region41: #{tpu_custom_call.1} parent=1 // pred_fallthru
      _
    %p81 = scmp.eq.s32.totalorder 0, 1
    %v82 = vld [vmem:[#allocation3] sm:$0xff]
    %v83 = vld [vmem:[#allocation3 + $0x8] sm:$0xff]
    %v84 = vld [vmem:[#allocation3 + $0x10] sm:$0xff]
    %v85 = vld [vmem:[#allocation3 + $0x18] sm:$0xff]
    %v86 = vld [vmem:[#allocation3 + $0x20] sm:$0xff]
    %v87 = vld [vmem:[#allocation3 + $0x28] sm:$0xff]
    %v88 = vld [vmem:[#allocation3 + $0x30] sm:$0xff]
    %v89 = vld [vmem:[#allocation3 + $0x38] sm:$0xff]
    %v90 = vld [vmem:[#allocation6] sm:$0xff]
    %v91 = vld [vmem:[#allocation6 + $0x8] sm:$0xff]
    %v92 = vld [vmem:[#allocation6 + $0x10] sm:$0xff]
    %v93 = vld [vmem:[#allocation6 + $0x18] sm:$0xff]
    %v94 = vld [vmem:[%s3] sm:$0x1]
    %v96 = vlaneseq
    %v97 = vshrl.u32 %v96, 7
    %v98 = vsub.s32 0, %v97
    %v99 = vrot.slane %v94, %v98
    %vm101 = vcmask 261120
    %v103 = vsel %vm101, %v82, 0
    %v106 = vsel %vm101, %v83, 0
    %v109 = vsel %vm101, %v84, 0
    %v112 = vsel %vm101, %v85, 0
    %v115 = vsel %vm101, %v86, 0
    %v118 = vsel %vm101, %v87, 0
    %v121 = vsel %vm101, %v88, 0
    %v124 = vsel %vm101, %v89, 0
    %126 = vmatprep.subr.mxu0 0.0
    %127 = vmatpush1.msra.mxu0 0.0
    %128 = vmatprep.subr.mxu0 0.0
    %129 = vmatpush1.msra.mxu0 0.0
    %130 = vmatprep.subr.mxu0 0.0
    %131 = vmatpush1.msra.mxu0 0.0
    %132 = vmatprep.subr.mxu0 0.0
    %133 = vmatpush1.msra.mxu0 0.0
    %134 = vmatprep.subr.mxu0 0.0
    %135 = vmatpush1.msra.mxu0 0.0
    %136 = vmatprep.subr.mxu0 0.0
    %137 = vmatpush1.msra.mxu0 0.0
    %138 = vmatprep.subr.mxu0 0.0
    %139 = vmatpush1.msra.mxu0 0.0
    %140 = vmatprep.subr.mxu0 0.0
    %141 = vmatpush1.msra.mxu0 0.0
    %142 = vmatprep.subr.mxu0 0.0
    %143 = vmatpush1.msra.mxu0 0.0
    %144 = vmatprep.subr.mxu0 0.0
    %145 = vmatpush1.msra.mxu0 0.0
    %146 = vmatprep.subr.mxu0 0.0
    %147 = vmatpush1.msra.mxu0 0.0
    %148 = vmatprep.subr.mxu0 0.0
    %149 = vmatpush1.msra.mxu0 0.0
    %150 = vmatprep.subr.mxu0 0.0
    %151 = vmatpush1.msra.mxu0 %v93
    %152 = vmatprep.subr.mxu0 0.0
    %153 = vmatpush1.msra.mxu0 %v92
    %154 = vmatprep.subr.mxu0 0.0
    %155 = vmatpush1.msra.mxu0 %v91
    %156 = vmatprep.subr.mxu0 0.0
    %157 = vmatpush1.msra.mxu0 %v90
    %158 = vmatprep.subr.mxu0 0.0
    %159 = vmatpush2.msra.mxu0 0.0
    %160 = vmatprep.subr.mxu0 0.0
    %161 = vmatpush2.msra.mxu0 0.0
    %162 = vmatprep.subr.mxu0 0.0
    %163 = vmatpush2.msra.mxu0 0.0
    %164 = vmatprep.subr.mxu0 0.0
    %165 = vmatpush2.msra.mxu0 0.0
    %166 = vmatprep.subr.mxu0 0.0
    %167 = vmatpush2.msra.mxu0 0.0
    %168 = vmatprep.subr.mxu0 0.0
    %169 = vmatpush2.msra.mxu0 0.0
    %170 = vmatprep.subr.mxu0 0.0
    %171 = vmatpush2.msra.mxu0 0.0
    %172 = vmatprep.subr.mxu0 0.0
    %173 = vmatpush2.msra.mxu0 0.0
    %174 = vmatprep.subr.mxu0 0.0
    %175 = vmatpush2.msra.mxu0 0.0
    %176 = vmatprep.subr.mxu0 0.0
    %177 = vmatpush2.msra.mxu0 0.0
    %178 = vmatprep.subr.mxu0 0.0
    %179 = vmatpush2.msra.mxu0 0.0
    %180 = vmatprep.subr.mxu0 0.0
    %181 = vmatpush2.msra.mxu0 0.0
    %182 = vmatprep.subr.mxu0 0.0
    %183 = vmatpush2.msra.mxu0 0.0
    %184 = vmatprep.subr.mxu0 0.0
    %185 = vmatpush2.msra.mxu0 0.0
    %186 = vmatprep.subr.mxu0 0.0
    %187 = vmatpush2.msra.mxu0 0.0
    %188 = vmatprep.subr.mxu0 0.0
    %189 = vmatpush2.msra.mxu0 0.0
    %190 = vmatprep.mubr.f32.mxu0 0.0
    %191 = vmatmul.mubr.f32.gmra.mxu0 %v103
    %v192 = vpop.f32.mrf.mxu0
    %v193 = vadd.f32 %v99, %v192
    %v194 = vpop.f32.mrf.mxu0
    %195 = vmatprep.mubr.f32.mxu0 0.0
    %196 = vmatmul.mubr.f32.gmra.mxu0 %v106
    %v197 = vpop.f32.mrf.mxu0
    %v198 = vadd.f32 %v99, %v197
    %v199 = vpop.f32.mrf.mxu0
    %200 = vmatprep.mubr.f32.mxu0 0.0
    %201 = vmatmul.mubr.f32.gmra.mxu0 %v109
    %v202 = vpop.f32.mrf.mxu0
    %v203 = vadd.f32 %v99, %v202
    %v204 = vpop.f32.mrf.mxu0
    %205 = vmatprep.mubr.f32.mxu0 0.0
    %206 = vmatmul.mubr.f32.gmra.mxu0 %v112
    %v207 = vpop.f32.mrf.mxu0
    %v208 = vadd.f32 %v99, %v207
    %v209 = vpop.f32.mrf.mxu0
    %210 = vmatprep.mubr.f32.mxu0 0.0
    %211 = vmatmul.mubr.f32.gmra.mxu0 %v115
    %v212 = vpop.f32.mrf.mxu0
    %v213 = vadd.f32 %v99, %v212
    %v214 = vpop.f32.mrf.mxu0
    %215 = vmatprep.mubr.f32.mxu0 0.0
    %216 = vmatmul.mubr.f32.gmra.mxu0 %v118
    %v217 = vpop.f32.mrf.mxu0
    %v218 = vadd.f32 %v99, %v217
    %v219 = vpop.f32.mrf.mxu0
    %220 = vmatprep.mubr.f32.mxu0 0.0
    %221 = vmatmul.mubr.f32.gmra.mxu0 %v121
    %v222 = vpop.f32.mrf.mxu0
    %v223 = vadd.f32 %v99, %v222
    %v224 = vpop.f32.mrf.mxu0
    %225 = vmatprep.mubr.f32.mxu0 0.0
    %226 = vmatmul.mubr.f32.gmra.mxu0 %v124
    %v227 = vpop.f32.mrf.mxu0
    %v228 = vadd.f32 %v99, %v227
    %v229 = vpop.f32.mrf.mxu0
    %230 = vdwg.mxu0
    %231 = vst [vmem:[#allocation2] sm:$0xff] %v193
    %232 = vst [vmem:[#allocation2 + $0x8] sm:$0xff] %v198
    %233 = vst [vmem:[#allocation2 + $0x10] sm:$0xff] %v203
    %234 = vst [vmem:[#allocation2 + $0x18] sm:$0xff] %v208
    %235 = vst [vmem:[#allocation2 + $0x20] sm:$0xff] %v213
    %236 = vst [vmem:[#allocation2 + $0x28] sm:$0xff] %v218
    %237 = vst [vmem:[#allocation2 + $0x30] sm:$0xff] %v223
    %238 = vst [vmem:[#allocation2 + $0x38] sm:$0xff] %v228
    %v239 = vld [vmem:[#allocation8] sm:$0xff]
    %v240 = vld [vmem:[#allocation8 + $0x8] sm:$0xff]
    %v241 = vld [vmem:[#allocation8 + $0x10] sm:$0xff]
    %v242 = vld [vmem:[#allocation8 + $0x18] sm:$0xff]
    %v243 = vld [vmem:[#allocation9] sm:$0xff]
    %v244 = vld [vmem:[%s5] sm:$0xff]
    %s245 = scalar_select %p81, 7, 0
    %s246 = smul.u32 %s245, 8
    %s247 = scalar_lea.vmem [#allocation2], %s246
    %v248 = vld [vmem:[%s247] sm:$0xff]
    %v250 = vsel %vm101, %v243, 0
    %252 = vmatprep.subr.mxu0 0.0
    %253 = vmatpush1.msra.mxu0 0.0
    %254 = vmatprep.subr.mxu0 0.0
    %255 = vmatpush1.msra.mxu0 0.0
    %256 = vmatprep.subr.mxu0 0.0
    %257 = vmatpush1.msra.mxu0 0.0
    %258 = vmatprep.subr.mxu0 0.0
    %259 = vmatpush1.msra.mxu0 0.0
    %260 = vmatprep.subr.mxu0 0.0
    %261 = vmatpush1.msra.mxu0 0.0
    %262 = vmatprep.subr.mxu0 0.0
    %263 = vmatpush1.msra.mxu0 0.0
    %264 = vmatprep.subr.mxu0 0.0
    %265 = vmatpush1.msra.mxu0 0.0
    %266 = vmatprep.subr.mxu0 0.0
    %267 = vmatpush1.msra.mxu0 0.0
    %268 = vmatprep.subr.mxu0 0.0
    %269 = vmatpush1.msra.mxu0 0.0
    %270 = vmatprep.subr.mxu0 0.0
    %271 = vmatpush1.msra.mxu0 0.0
    %272 = vmatprep.subr.mxu0 0.0
    %273 = vmatpush1.msra.mxu0 0.0
    %274 = vmatprep.subr.mxu0 0.0
    %275 = vmatpush1.msra.mxu0 0.0
    %276 = vmatprep.subr.mxu0 0.0
    %277 = vmatpush1.msra.mxu0 %v242
    %278 = vmatprep.subr.mxu0 0.0
    %279 = vmatpush1.msra.mxu0 %v241
    %280 = vmatprep.subr.mxu0 0.0
    %281 = vmatpush1.msra.mxu0 %v240
    %282 = vmatprep.subr.mxu0 0.0
    %283 = vmatpush1.msra.mxu0 %v239
    %284 = vmatprep.subr.mxu0 0.0
    %285 = vmatpush2.msra.mxu0 0.0
    %286 = vmatprep.subr.mxu0 0.0
    %287 = vmatpush2.msra.mxu0 0.0
    %288 = vmatprep.subr.mxu0 0.0
    %289 = vmatpush2.msra.mxu0 0.0
    %290 = vmatprep.subr.mxu0 0.0
    %291 = vmatpush2.msra.mxu0 0.0
    %292 = vmatprep.subr.mxu0 0.0
    %293 = vmatpush2.msra.mxu0 0.0
    %294 = vmatprep.subr.mxu0 0.0
    %295 = vmatpush2.msra.mxu0 0.0
    %296 = vmatprep.subr.mxu0 0.0
    %297 = vmatpush2.msra.mxu0 0.0
    %298 = vmatprep.subr.mxu0 0.0
    %299 = vmatpush2.msra.mxu0 0.0
    %300 = vmatprep.subr.mxu0 0.0
    %301 = vmatpush2.msra.mxu0 0.0
    %302 = vmatprep.subr.mxu0 0.0
    %303 = vmatpush2.msra.mxu0 0.0
    %304 = vmatprep.subr.mxu0 0.0
    %305 = vmatpush2.msra.mxu0 0.0
    %306 = vmatprep.subr.mxu0 0.0
    %307 = vmatpush2.msra.mxu0 0.0
    %308 = vmatprep.subr.mxu0 0.0
    %309 = vmatpush2.msra.mxu0 0.0
    %310 = vmatprep.subr.mxu0 0.0
    %311 = vmatpush2.msra.mxu0 0.0
    %312 = vmatprep.subr.mxu0 0.0
    %313 = vmatpush2.msra.mxu0 0.0
    %314 = vmatprep.subr.mxu0 0.0
    %315 = vmatpush2.msra.mxu0 0.0
    %316 = vmatprep.mubr.f32.mxu0 0.0
    %317 = vmatmul.mubr.f32.gmra.mxu0 %v250
    %v318 = vpop.f32.mrf.mxu0
    %v319 = vadd.f32 0.0, %v318
    %v320 = vpop.f32.mrf.mxu0
    %321 = vdwg.mxu0
    %v322 = vadd.f32 %v248, %v319
    %v323 = vxor.u32 %v322, 2147483648
    %v324 = vmul.f32 %v323, 1.442695
    %v325 = vpow.pop %v324
    %v326 = vadd.f32 %v325, 1.0
    %v327 = vrcp.pop %v326
    %v328 = vmul.f32 1.0, %v327
    %v329 = vtanh.pop %v322
    %331 = vrot.lane.b32.xlu0 %v244, 32
    %v332 = vpop.permute.xlu0 %331
    %v334 = vmul.f32 %v328, %v332
    %336 = vrot.lane.b32.xlu0 %v329, 32
    %v337 = vpop.permute.xlu0 %336
    %v339 = vmul.f32 %v328, %v337
    %341 = vrot.lane.b32.xlu0 %v339, 32
    %v342 = vpop.permute.xlu0 %341
    %v344 = vadd.f32 %v334, %v342
    %v345 = vtanh.pop %v344
    %347 = vrot.lane.b32.xlu0 %v345, 32
    %v348 = vpop.permute.xlu0 %347
    %v350 = vmul.f32 %v328, %v348
    %352 = vrot.lane.b32.xlu0 %v350, 64
    %v353 = vpop.permute.xlu0 %352
    %s355 = scalar_lea.vmem [#allocation11], %s246
    %356 = vst.msk [vmem:[%s355] sm:$0xff] %vm101, %v353
    %s357 = scalar_select %p81, 6, 1
    %s358 = smul.u32 %s357, 8
    %s359 = scalar_lea.vmem [#allocation2], %s358
    %v360 = vld [vmem:[%s359] sm:$0xff]
    %v361 = vsel %vm101, %v353, 0
    %363 = vmatprep.subr.mxu0 0.0
    %364 = vmatpush1.msra.mxu0 0.0
    %365 = vmatprep.subr.mxu0 0.0
    %366 = vmatpush1.msra.mxu0 0.0
    %367 = vmatprep.subr.mxu0 0.0
    %368 = vmatpush1.msra.mxu0 0.0
    %369 = vmatprep.subr.mxu0 0.0
    %370 = vmatpush1.msra.mxu0 0.0
    %371 = vmatprep.subr.mxu0 0.0
    %372 = vmatpush1.msra.mxu0 0.0
    %373 = vmatprep.subr.mxu0 0.0
    %374 = vmatpush1.msra.mxu0 0.0
    %375 = vmatprep.subr.mxu0 0.0
    %376 = vmatpush1.msra.mxu0 0.0
    %377 = vmatprep.subr.mxu0 0.0
    %378 = vmatpush1.msra.mxu0 0.0
    %379 = vmatprep.subr.mxu0 0.0
    %380 = vmatpush1.msra.mxu0 0.0
    %381 = vmatprep.subr.mxu0 0.0
    %382 = vmatpush1.msra.mxu0 0.0
    %383 = vmatprep.subr.mxu0 0.0
    %384 = vmatpush1.msra.mxu0 0.0
    %385 = vmatprep.subr.mxu0 0.0
    %386 = vmatpush1.msra.mxu0 0.0
    %387 = vmatprep.subr.mxu0 0.0
    %388 = vmatpush1.msra.mxu0 %v242
    %389 = vmatprep.subr.mxu0 0.0
    %390 = vmatpush1.msra.mxu0 %v241
    %391 = vmatprep.subr.mxu0 0.0
    %392 = vmatpush1.msra.mxu0 %v240
    %393 = vmatprep.subr.mxu0 0.0
    %394 = vmatpush1.msra.mxu0 %v239
    %395 = vmatprep.subr.mxu0 0.0
    %396 = vmatpush2.msra.mxu0 0.0
    %397 = vmatprep.subr.mxu0 0.0
    %398 = vmatpush2.msra.mxu0 0.0
    %399 = vmatprep.subr.mxu0 0.0
    %400 = vmatpush2.msra.mxu0 0.0
    %401 = vmatprep.subr.mxu0 0.0
    %402 = vmatpush2.msra.mxu0 0.0
    %403 = vmatprep.subr.mxu0 0.0
    %404 = vmatpush2.msra.mxu0 0.0
    %405 = vmatprep.subr.mxu0 0.0
    %406 = vmatpush2.msra.mxu0 0.0
    %407 = vmatprep.subr.mxu0 0.0
    %408 = vmatpush2.msra.mxu0 0.0
    %409 = vmatprep.subr.mxu0 0.0
    %410 = vmatpush2.msra.mxu0 0.0
    %411 = vmatprep.subr.mxu0 0.0
    %412 = vmatpush2.msra.mxu0 0.0
    %413 = vmatprep.subr.mxu0 0.0
    %414 = vmatpush2.msra.mxu0 0.0
    %415 = vmatprep.subr.mxu0 0.0
    %416 = vmatpush2.msra.mxu0 0.0
    %417 = vmatprep.subr.mxu0 0.0
    %418 = vmatpush2.msra.mxu0 0.0
    %419 = vmatprep.subr.mxu0 0.0
    %420 = vmatpush2.msra.mxu0 0.0
    %421 = vmatprep.subr.mxu0 0.0
    %422 = vmatpush2.msra.mxu0 0.0
    %423 = vmatprep.subr.mxu0 0.0
    %424 = vmatpush2.msra.mxu0 0.0
    %425 = vmatprep.subr.mxu0 0.0
    %426 = vmatpush2.msra.mxu0 0.0
    %427 = vmatprep.mubr.f32.mxu0 0.0
    %428 = vmatmul.mubr.f32.gmra.mxu0 %v361
    %v429 = vpop.f32.mrf.mxu0
    %v430 = vadd.f32 0.0, %v429
    %v431 = vpop.f32.mrf.mxu0
    %432 = vdwg.mxu0
    %v433 = vadd.f32 %v360, %v430
    %v434 = vxor.u32 %v433, 2147483648
    %v435 = vmul.f32 %v434, 1.442695
    %v436 = vpow.pop %v435
    %v437 = vadd.f32 %v436, 1.0
    %v438 = vrcp.pop %v437
    %v439 = vmul.f32 1.0, %v438
    %v440 = vtanh.pop %v433
    %v441 = vmul.f32 %v439, %v344
    %443 = vrot.lane.b32.xlu0 %v440, 32
    %v444 = vpop.permute.xlu0 %443
    %v446 = vmul.f32 %v439, %v444
    %448 = vrot.lane.b32.xlu0 %v446, 32
    %v449 = vpop.permute.xlu0 %448
    %v451 = vadd.f32 %v441, %v449
    %v452 = vtanh.pop %v451
    %454 = vrot.lane.b32.xlu0 %v452, 32
    %v455 = vpop.permute.xlu0 %454
    %v457 = vmul.f32 %v439, %v455
    %459 = vrot.lane.b32.xlu0 %v457, 64
    %v460 = vpop.permute.xlu0 %459
    %s462 = scalar_lea.vmem [#allocation11], %s358
    %463 = vst.msk [vmem:[%s462] sm:$0xff] %vm101, %v460
    %s464 = scalar_select %p81, 5, 2
    %s465 = smul.u32 %s464, 8
    %s466 = scalar_lea.vmem [#allocation2], %s465
    %v467 = vld [vmem:[%s466] sm:$0xff]
    %v468 = vsel %vm101, %v460, 0
    %470 = vmatprep.subr.mxu0 0.0
    %471 = vmatpush1.msra.mxu0 0.0
    %472 = vmatprep.subr.mxu0 0.0
    %473 = vmatpush1.msra.mxu0 0.0
    %474 = vmatprep.subr.mxu0 0.0
    %475 = vmatpush1.msra.mxu0 0.0
    %476 = vmatprep.subr.mxu0 0.0
    %477 = vmatpush1.msra.mxu0 0.0
    %478 = vmatprep.subr.mxu0 0.0
    %479 = vmatpush1.msra.mxu0 0.0
    %480 = vmatprep.subr.mxu0 0.0
    %481 = vmatpush1.msra.mxu0 0.0
    %482 = vmatprep.subr.mxu0 0.0
    %483 = vmatpush1.msra.mxu0 0.0
    %484 = vmatprep.subr.mxu0 0.0
    %485 = vmatpush1.msra.mxu0 0.0
    %486 = vmatprep.subr.mxu0 0.0
    %487 = vmatpush1.msra.mxu0 0.0
    %488 = vmatprep.subr.mxu0 0.0
    %489 = vmatpush1.msra.mxu0 0.0
    %490 = vmatprep.subr.mxu0 0.0
    %491 = vmatpush1.msra.mxu0 0.0
    %492 = vmatprep.subr.mxu0 0.0
    %493 = vmatpush1.msra.mxu0 0.0
    %494 = vmatprep.subr.mxu0 0.0
    %495 = vmatpush1.msra.mxu0 %v242
    %496 = vmatprep.subr.mxu0 0.0
    %497 = vmatpush1.msra.mxu0 %v241
    %498 = vmatprep.subr.mxu0 0.0
    %499 = vmatpush1.msra.mxu0 %v240
    %500 = vmatprep.subr.mxu0 0.0
    %501 = vmatpush1.msra.mxu0 %v239
    %502 = vmatprep.subr.mxu0 0.0
    %503 = vmatpush2.msra.mxu0 0.0
    %504 = vmatprep.subr.mxu0 0.0
    %505 = vmatpush2.msra.mxu0 0.0
    %506 = vmatprep.subr.mxu0 0.0
    %507 = vmatpush2.msra.mxu0 0.0
    %508 = vmatprep.subr.mxu0 0.0
    %509 = vmatpush2.msra.mxu0 0.0
    %510 = vmatprep.subr.mxu0 0.0
    %511 = vmatpush2.msra.mxu0 0.0
    %512 = vmatprep.subr.mxu0 0.0
    %513 = vmatpush2.msra.mxu0 0.0
    %514 = vmatprep.subr.mxu0 0.0
    %515 = vmatpush2.msra.mxu0 0.0
    %516 = vmatprep.subr.mxu0 0.0
    %517 = vmatpush2.msra.mxu0 0.0
    %518 = vmatprep.subr.mxu0 0.0
    %519 = vmatpush2.msra.mxu0 0.0
    %520 = vmatprep.subr.mxu0 0.0
    %521 = vmatpush2.msra.mxu0 0.0
    %522 = vmatprep.subr.mxu0 0.0
    %523 = vmatpush2.msra.mxu0 0.0
    %524 = vmatprep.subr.mxu0 0.0
    %525 = vmatpush2.msra.mxu0 0.0
    %526 = vmatprep.subr.mxu0 0.0
    %527 = vmatpush2.msra.mxu0 0.0
    %528 = vmatprep.subr.mxu0 0.0
    %529 = vmatpush2.msra.mxu0 0.0
    %530 = vmatprep.subr.mxu0 0.0
    %531 = vmatpush2.msra.mxu0 0.0
    %532 = vmatprep.subr.mxu0 0.0
    %533 = vmatpush2.msra.mxu0 0.0
    %534 = vmatprep.mubr.f32.mxu0 0.0
    %535 = vmatmul.mubr.f32.gmra.mxu0 %v468
    %v536 = vpop.f32.mrf.mxu0
    %v537 = vadd.f32 0.0, %v536
    %v538 = vpop.f32.mrf.mxu0
    %539 = vdwg.mxu0
    %v540 = vadd.f32 %v467, %v537
    %v541 = vxor.u32 %v540, 2147483648
    %v542 = vmul.f32 %v541, 1.442695
    %v543 = vpow.pop %v542
    %v544 = vadd.f32 %v543, 1.0
    %v545 = vrcp.pop %v544
    %v546 = vmul.f32 1.0, %v545
    %v547 = vtanh.pop %v540
    %v548 = vmul.f32 %v546, %v451
    %550 = vrot.lane.b32.xlu0 %v547, 32
    %v551 = vpop.permute.xlu0 %550
    %v553 = vmul.f32 %v546, %v551
    %555 = vrot.lane.b32.xlu0 %v553, 32
    %v556 = vpop.permute.xlu0 %555
    %v558 = vadd.f32 %v548, %v556
    %v559 = vtanh.pop %v558
    %561 = vrot.lane.b32.xlu0 %v559, 32
    %v562 = vpop.permute.xlu0 %561
    %v564 = vmul.f32 %v546, %v562
    %566 = vrot.lane.b32.xlu0 %v564, 64
    %v567 = vpop.permute.xlu0 %566
    %s569 = scalar_lea.vmem [#allocation11], %s465
    %570 = vst.msk [vmem:[%s569] sm:$0xff] %vm101, %v567
    %s571 = scalar_select %p81, 4, 3
    %s572 = smul.u32 %s571, 8
    %s573 = scalar_lea.vmem [#allocation2], %s572
    %v574 = vld [vmem:[%s573] sm:$0xff]
    %v575 = vsel %vm101, %v567, 0
    %577 = vmatprep.subr.mxu0 0.0
    %578 = vmatpush1.msra.mxu0 0.0
    %579 = vmatprep.subr.mxu0 0.0
    %580 = vmatpush1.msra.mxu0 0.0
    %581 = vmatprep.subr.mxu0 0.0
    %582 = vmatpush1.msra.mxu0 0.0
    %583 = vmatprep.subr.mxu0 0.0
    %584 = vmatpush1.msra.mxu0 0.0
    %585 = vmatprep.subr.mxu0 0.0
    %586 = vmatpush1.msra.mxu0 0.0
    %587 = vmatprep.subr.mxu0 0.0
    %588 = vmatpush1.msra.mxu0 0.0
    %589 = vmatprep.subr.mxu0 0.0
    %590 = vmatpush1.msra.mxu0 0.0
    %591 = vmatprep.subr.mxu0 0.0
    %592 = vmatpush1.msra.mxu0 0.0
    %593 = vmatprep.subr.mxu0 0.0
    %594 = vmatpush1.msra.mxu0 0.0
    %595 = vmatprep.subr.mxu0 0.0
    %596 = vmatpush1.msra.mxu0 0.0
    %597 = vmatprep.subr.mxu0 0.0
    %598 = vmatpush1.msra.mxu0 0.0
    %599 = vmatprep.subr.mxu0 0.0
    %600 = vmatpush1.msra.mxu0 0.0
    %601 = vmatprep.subr.mxu0 0.0
    %602 = vmatpush1.msra.mxu0 %v242
    %603 = vmatprep.subr.mxu0 0.0
    %604 = vmatpush1.msra.mxu0 %v241
    %605 = vmatprep.subr.mxu0 0.0
    %606 = vmatpush1.msra.mxu0 %v240
    %607 = vmatprep.subr.mxu0 0.0
    %608 = vmatpush1.msra.mxu0 %v239
    %609 = vmatprep.subr.mxu0 0.0
    %610 = vmatpush2.msra.mxu0 0.0
    %611 = vmatprep.subr.mxu0 0.0
    %612 = vmatpush2.msra.mxu0 0.0
    %613 = vmatprep.subr.mxu0 0.0
    %614 = vmatpush2.msra.mxu0 0.0
    %615 = vmatprep.subr.mxu0 0.0
    %616 = vmatpush2.msra.mxu0 0.0
    %617 = vmatprep.subr.mxu0 0.0
    %618 = vmatpush2.msra.mxu0 0.0
    %619 = vmatprep.subr.mxu0 0.0
    %620 = vmatpush2.msra.mxu0 0.0
    %621 = vmatprep.subr.mxu0 0.0
    %622 = vmatpush2.msra.mxu0 0.0
    %623 = vmatprep.subr.mxu0 0.0
    %624 = vmatpush2.msra.mxu0 0.0
    %625 = vmatprep.subr.mxu0 0.0
    %626 = vmatpush2.msra.mxu0 0.0
    %627 = vmatprep.subr.mxu0 0.0
    %628 = vmatpush2.msra.mxu0 0.0
    %629 = vmatprep.subr.mxu0 0.0
    %630 = vmatpush2.msra.mxu0 0.0
    %631 = vmatprep.subr.mxu0 0.0
    %632 = vmatpush2.msra.mxu0 0.0
    %633 = vmatprep.subr.mxu0 0.0
    %634 = vmatpush2.msra.mxu0 0.0
    %635 = vmatprep.subr.mxu0 0.0
    %636 = vmatpush2.msra.mxu0 0.0
    %637 = vmatprep.subr.mxu0 0.0
    %638 = vmatpush2.msra.mxu0 0.0
    %639 = vmatprep.subr.mxu0 0.0
    %640 = vmatpush2.msra.mxu0 0.0
    %641 = vmatprep.mubr.f32.mxu0 0.0
    %642 = vmatmul.mubr.f32.gmra.mxu0 %v575
    %v643 = vpop.f32.mrf.mxu0
    %v644 = vadd.f32 0.0, %v643
    %v645 = vpop.f32.mrf.mxu0
    %646 = vdwg.mxu0
    %v647 = vadd.f32 %v574, %v644
    %v648 = vxor.u32 %v647, 2147483648
    %v649 = vmul.f32 %v648, 1.442695
    %v650 = vpow.pop %v649
    %v651 = vadd.f32 %v650, 1.0
    %v652 = vrcp.pop %v651
    %v653 = vmul.f32 1.0, %v652
    %v654 = vtanh.pop %v647
    %v655 = vmul.f32 %v653, %v558
    %657 = vrot.lane.b32.xlu0 %v654, 32
    %v658 = vpop.permute.xlu0 %657
    %v660 = vmul.f32 %v653, %v658
    %662 = vrot.lane.b32.xlu0 %v660, 32
    %v663 = vpop.permute.xlu0 %662
    %v665 = vadd.f32 %v655, %v663
    %v666 = vtanh.pop %v665
    %668 = vrot.lane.b32.xlu0 %v666, 32
    %v669 = vpop.permute.xlu0 %668
    %v671 = vmul.f32 %v653, %v669
    %673 = vrot.lane.b32.xlu0 %v671, 64
    %v674 = vpop.permute.xlu0 %673
    %s676 = scalar_lea.vmem [#allocation11], %s572
    %677 = vst.msk [vmem:[%s676] sm:$0xff] %vm101, %v674
    %s678 = scalar_select %p81, 3, 4
    %s679 = smul.u32 %s678, 8
    %s680 = scalar_lea.vmem [#allocation2], %s679
    %v681 = vld [vmem:[%s680] sm:$0xff]
    %v682 = vsel %vm101, %v674, 0
    %684 = vmatprep.subr.mxu0 0.0
    %685 = vmatpush1.msra.mxu0 0.0
    %686 = vmatprep.subr.mxu0 0.0
    %687 = vmatpush1.msra.mxu0 0.0
    %688 = vmatprep.subr.mxu0 0.0
    %689 = vmatpush1.msra.mxu0 0.0
    %690 = vmatprep.subr.mxu0 0.0
    %691 = vmatpush1.msra.mxu0 0.0
    %692 = vmatprep.subr.mxu0 0.0
    %693 = vmatpush1.msra.mxu0 0.0
    %694 = vmatprep.subr.mxu0 0.0
    %695 = vmatpush1.msra.mxu0 0.0
    %696 = vmatprep.subr.mxu0 0.0
    %697 = vmatpush1.msra.mxu0 0.0
    %698 = vmatprep.subr.mxu0 0.0
    %699 = vmatpush1.msra.mxu0 0.0
    %700 = vmatprep.subr.mxu0 0.0
    %701 = vmatpush1.msra.mxu0 0.0
    %702 = vmatprep.subr.mxu0 0.0
    %703 = vmatpush1.msra.mxu0 0.0
    %704 = vmatprep.subr.mxu0 0.0
    %705 = vmatpush1.msra.mxu0 0.0
    %706 = vmatprep.subr.mxu0 0.0
    %707 = vmatpush1.msra.mxu0 0.0
    %708 = vmatprep.subr.mxu0 0.0
    %709 = vmatpush1.msra.mxu0 %v242
    %710 = vmatprep.subr.mxu0 0.0
    %711 = vmatpush1.msra.mxu0 %v241
    %712 = vmatprep.subr.mxu0 0.0
    %713 = vmatpush1.msra.mxu0 %v240
    %714 = vmatprep.subr.mxu0 0.0
    %715 = vmatpush1.msra.mxu0 %v239
    %716 = vmatprep.subr.mxu0 0.0
    %717 = vmatpush2.msra.mxu0 0.0
    %718 = vmatprep.subr.mxu0 0.0
    %719 = vmatpush2.msra.mxu0 0.0
    %720 = vmatprep.subr.mxu0 0.0
    %721 = vmatpush2.msra.mxu0 0.0
    %722 = vmatprep.subr.mxu0 0.0
    %723 = vmatpush2.msra.mxu0 0.0
    %724 = vmatprep.subr.mxu0 0.0
    %725 = vmatpush2.msra.mxu0 0.0
    %726 = vmatprep.subr.mxu0 0.0
    %727 = vmatpush2.msra.mxu0 0.0
    %728 = vmatprep.subr.mxu0 0.0
    %729 = vmatpush2.msra.mxu0 0.0
    %730 = vmatprep.subr.mxu0 0.0
    %731 = vmatpush2.msra.mxu0 0.0
    %732 = vmatprep.subr.mxu0 0.0
    %733 = vmatpush2.msra.mxu0 0.0
    %734 = vmatprep.subr.mxu0 0.0
    %735 = vmatpush2.msra.mxu0 0.0
    %736 = vmatprep.subr.mxu0 0.0
    %737 = vmatpush2.msra.mxu0 0.0
    %738 = vmatprep.subr.mxu0 0.0
    %739 = vmatpush2.msra.mxu0 0.0
    %740 = vmatprep.subr.mxu0 0.0
    %741 = vmatpush2.msra.mxu0 0.0
    %742 = vmatprep.subr.mxu0 0.0
    %743 = vmatpush2.msra.mxu0 0.0
    %744 = vmatprep.subr.mxu0 0.0
    %745 = vmatpush2.msra.mxu0 0.0
    %746 = vmatprep.subr.mxu0 0.0
    %747 = vmatpush2.msra.mxu0 0.0
    %748 = vmatprep.mubr.f32.mxu0 0.0
    %749 = vmatmul.mubr.f32.gmra.mxu0 %v682
    %v750 = vpop.f32.mrf.mxu0
    %v751 = vadd.f32 0.0, %v750
    %v752 = vpop.f32.mrf.mxu0
    %753 = vdwg.mxu0
    %v754 = vadd.f32 %v681, %v751
    %v755 = vxor.u32 %v754, 2147483648
    %v756 = vmul.f32 %v755, 1.442695
    %v757 = vpow.pop %v756
    %v758 = vadd.f32 %v757, 1.0
    %v759 = vrcp.pop %v758
    %v760 = vmul.f32 1.0, %v759
    %v761 = vtanh.pop %v754
    %v762 = vmul.f32 %v760, %v665
    %764 = vrot.lane.b32.xlu0 %v761, 32
    %v765 = vpop.permute.xlu0 %764
    %v767 = vmul.f32 %v760, %v765
    %769 = vrot.lane.b32.xlu0 %v767, 32
    %v770 = vpop.permute.xlu0 %769
    %v772 = vadd.f32 %v762, %v770
    %v773 = vtanh.pop %v772
    %775 = vrot.lane.b32.xlu0 %v773, 32
    %v776 = vpop.permute.xlu0 %775
    %v778 = vmul.f32 %v760, %v776
    %780 = vrot.lane.b32.xlu0 %v778, 64
    %v781 = vpop.permute.xlu0 %780
    %s783 = scalar_lea.vmem [#allocation11], %s679
    %784 = vst.msk [vmem:[%s783] sm:$0xff] %vm101, %v781
    %s785 = scalar_select %p81, 2, 5
    %s786 = smul.u32 %s785, 8
    %s787 = scalar_lea.vmem [#allocation2], %s786
    %v788 = vld [vmem:[%s787] sm:$0xff]
    %v789 = vsel %vm101, %v781, 0
    %791 = vmatprep.subr.mxu0 0.0
    %792 = vmatpush1.msra.mxu0 0.0
    %793 = vmatprep.subr.mxu0 0.0
    %794 = vmatpush1.msra.mxu0 0.0
    %795 = vmatprep.subr.mxu0 0.0
    %796 = vmatpush1.msra.mxu0 0.0
    %797 = vmatprep.subr.mxu0 0.0
    %798 = vmatpush1.msra.mxu0 0.0
    %799 = vmatprep.subr.mxu0 0.0
    %800 = vmatpush1.msra.mxu0 0.0
    %801 = vmatprep.subr.mxu0 0.0
    %802 = vmatpush1.msra.mxu0 0.0
    %803 = vmatprep.subr.mxu0 0.0
    %804 = vmatpush1.msra.mxu0 0.0
    %805 = vmatprep.subr.mxu0 0.0
    %806 = vmatpush1.msra.mxu0 0.0
    %807 = vmatprep.subr.mxu0 0.0
    %808 = vmatpush1.msra.mxu0 0.0
    %809 = vmatprep.subr.mxu0 0.0
    %810 = vmatpush1.msra.mxu0 0.0
    %811 = vmatprep.subr.mxu0 0.0
    %812 = vmatpush1.msra.mxu0 0.0
    %813 = vmatprep.subr.mxu0 0.0
    %814 = vmatpush1.msra.mxu0 0.0
    %815 = vmatprep.subr.mxu0 0.0
    %816 = vmatpush1.msra.mxu0 %v242
    %817 = vmatprep.subr.mxu0 0.0
    %818 = vmatpush1.msra.mxu0 %v241
    %819 = vmatprep.subr.mxu0 0.0
    %820 = vmatpush1.msra.mxu0 %v240
    %821 = vmatprep.subr.mxu0 0.0
    %822 = vmatpush1.msra.mxu0 %v239
    %823 = vmatprep.subr.mxu0 0.0
    %824 = vmatpush2.msra.mxu0 0.0
    %825 = vmatprep.subr.mxu0 0.0
    %826 = vmatpush2.msra.mxu0 0.0
    %827 = vmatprep.subr.mxu0 0.0
    %828 = vmatpush2.msra.mxu0 0.0
    %829 = vmatprep.subr.mxu0 0.0
    %830 = vmatpush2.msra.mxu0 0.0
    %831 = vmatprep.subr.mxu0 0.0
    %832 = vmatpush2.msra.mxu0 0.0
    %833 = vmatprep.subr.mxu0 0.0
    %834 = vmatpush2.msra.mxu0 0.0
    %835 = vmatprep.subr.mxu0 0.0
    %836 = vmatpush2.msra.mxu0 0.0
    %837 = vmatprep.subr.mxu0 0.0
    %838 = vmatpush2.msra.mxu0 0.0
    %839 = vmatprep.subr.mxu0 0.0
    %840 = vmatpush2.msra.mxu0 0.0
    %841 = vmatprep.subr.mxu0 0.0
    %842 = vmatpush2.msra.mxu0 0.0
    %843 = vmatprep.subr.mxu0 0.0
    %844 = vmatpush2.msra.mxu0 0.0
    %845 = vmatprep.subr.mxu0 0.0
    %846 = vmatpush2.msra.mxu0 0.0
    %847 = vmatprep.subr.mxu0 0.0
    %848 = vmatpush2.msra.mxu0 0.0
    %849 = vmatprep.subr.mxu0 0.0
    %850 = vmatpush2.msra.mxu0 0.0
    %851 = vmatprep.subr.mxu0 0.0
    %852 = vmatpush2.msra.mxu0 0.0
    %853 = vmatprep.subr.mxu0 0.0
    %854 = vmatpush2.msra.mxu0 0.0
    %855 = vmatprep.mubr.f32.mxu0 0.0
    %856 = vmatmul.mubr.f32.gmra.mxu0 %v789
    %v857 = vpop.f32.mrf.mxu0
    %v858 = vadd.f32 0.0, %v857
    %v859 = vpop.f32.mrf.mxu0
    %860 = vdwg.mxu0
    %v861 = vadd.f32 %v788, %v858
    %v862 = vxor.u32 %v861, 2147483648
    %v863 = vmul.f32 %v862, 1.442695
    %v864 = vpow.pop %v863
    %v865 = vadd.f32 %v864, 1.0
    %v866 = vrcp.pop %v865
    %v867 = vmul.f32 1.0, %v866
    %v868 = vtanh.pop %v861
    %v869 = vmul.f32 %v867, %v772
    %871 = vrot.lane.b32.xlu0 %v868, 32
    %v872 = vpop.permute.xlu0 %871
    %v874 = vmul.f32 %v867, %v872
    %876 = vrot.lane.b32.xlu0 %v874, 32
    %v877 = vpop.permute.xlu0 %876
    %v879 = vadd.f32 %v869, %v877
    %v880 = vtanh.pop %v879
    %882 = vrot.lane.b32.xlu0 %v880, 32
    %v883 = vpop.permute.xlu0 %882
    %v885 = vmul.f32 %v867, %v883
    %887 = vrot.lane.b32.xlu0 %v885, 64
    %v888 = vpop.permute.xlu0 %887
    %s890 = scalar_lea.vmem [#allocation11], %s786
    %891 = vst.msk [vmem:[%s890] sm:$0xff] %vm101, %v888
    %s892 = scalar_select %p81, 1, 6
    %s893 = smul.u32 %s892, 8
    %s894 = scalar_lea.vmem [#allocation2], %s893
    %v895 = vld [vmem:[%s894] sm:$0xff]
    %v896 = vsel %vm101, %v888, 0
    %898 = vmatprep.subr.mxu0 0.0
    %899 = vmatpush1.msra.mxu0 0.0
    %900 = vmatprep.subr.mxu0 0.0
    %901 = vmatpush1.msra.mxu0 0.0
    %902 = vmatprep.subr.mxu0 0.0
    %903 = vmatpush1.msra.mxu0 0.0
    %904 = vmatprep.subr.mxu0 0.0
    %905 = vmatpush1.msra.mxu0 0.0
    %906 = vmatprep.subr.mxu0 0.0
    %907 = vmatpush1.msra.mxu0 0.0
    %908 = vmatprep.subr.mxu0 0.0
    %909 = vmatpush1.msra.mxu0 0.0
    %910 = vmatprep.subr.mxu0 0.0
    %911 = vmatpush1.msra.mxu0 0.0
    %912 = vmatprep.subr.mxu0 0.0
    %913 = vmatpush1.msra.mxu0 0.0
    %914 = vmatprep.subr.mxu0 0.0
    %915 = vmatpush1.msra.mxu0 0.0
    %916 = vmatprep.subr.mxu0 0.0
    %917 = vmatpush1.msra.mxu0 0.0
    %918 = vmatprep.subr.mxu0 0.0
    %919 = vmatpush1.msra.mxu0 0.0
    %920 = vmatprep.subr.mxu0 0.0
    %921 = vmatpush1.msra.mxu0 0.0
    %922 = vmatprep.subr.mxu0 0.0
    %923 = vmatpush1.msra.mxu0 %v242
    %924 = vmatprep.subr.mxu0 0.0
    %925 = vmatpush1.msra.mxu0 %v241
    %926 = vmatprep.subr.mxu0 0.0
    %927 = vmatpush1.msra.mxu0 %v240
    %928 = vmatprep.subr.mxu0 0.0
    %929 = vmatpush1.msra.mxu0 %v239
    %930 = vmatprep.subr.mxu0 0.0
    %931 = vmatpush2.msra.mxu0 0.0
    %932 = vmatprep.subr.mxu0 0.0
    %933 = vmatpush2.msra.mxu0 0.0
    %934 = vmatprep.subr.mxu0 0.0
    %935 = vmatpush2.msra.mxu0 0.0
    %936 = vmatprep.subr.mxu0 0.0
    %937 = vmatpush2.msra.mxu0 0.0
    %938 = vmatprep.subr.mxu0 0.0
    %939 = vmatpush2.msra.mxu0 0.0
    %940 = vmatprep.subr.mxu0 0.0
    %941 = vmatpush2.msra.mxu0 0.0
    %942 = vmatprep.subr.mxu0 0.0
    %943 = vmatpush2.msra.mxu0 0.0
    %944 = vmatprep.subr.mxu0 0.0
    %945 = vmatpush2.msra.mxu0 0.0
    %946 = vmatprep.subr.mxu0 0.0
    %947 = vmatpush2.msra.mxu0 0.0
    %948 = vmatprep.subr.mxu0 0.0
    %949 = vmatpush2.msra.mxu0 0.0
    %950 = vmatprep.subr.mxu0 0.0
    %951 = vmatpush2.msra.mxu0 0.0
    %952 = vmatprep.subr.mxu0 0.0
    %953 = vmatpush2.msra.mxu0 0.0
    %954 = vmatprep.subr.mxu0 0.0
    %955 = vmatpush2.msra.mxu0 0.0
    %956 = vmatprep.subr.mxu0 0.0
    %957 = vmatpush2.msra.mxu0 0.0
    %958 = vmatprep.subr.mxu0 0.0
    %959 = vmatpush2.msra.mxu0 0.0
    %960 = vmatprep.subr.mxu0 0.0
    %961 = vmatpush2.msra.mxu0 0.0
    %962 = vmatprep.mubr.f32.mxu0 0.0
    %963 = vmatmul.mubr.f32.gmra.mxu0 %v896
    %v964 = vpop.f32.mrf.mxu0
    %v965 = vadd.f32 0.0, %v964
    %v966 = vpop.f32.mrf.mxu0
    %967 = vdwg.mxu0
    %v968 = vadd.f32 %v895, %v965
    %v969 = vxor.u32 %v968, 2147483648
    %v970 = vmul.f32 %v969, 1.442695
    %v971 = vpow.pop %v970
    %v972 = vadd.f32 %v971, 1.0
    %v973 = vrcp.pop %v972
    %v974 = vmul.f32 1.0, %v973
    %v975 = vtanh.pop %v968
    %v976 = vmul.f32 %v974, %v879
    %978 = vrot.lane.b32.xlu0 %v975, 32
    %v979 = vpop.permute.xlu0 %978
    %v981 = vmul.f32 %v974, %v979
    %983 = vrot.lane.b32.xlu0 %v981, 32
    %v984 = vpop.permute.xlu0 %983
    %v986 = vadd.f32 %v976, %v984
    %v987 = vtanh.pop %v986
    %989 = vrot.lane.b32.xlu0 %v987, 32
    %v990 = vpop.permute.xlu0 %989
    %v992 = vmul.f32 %v974, %v990
    %994 = vrot.lane.b32.xlu0 %v992, 64
    %v995 = vpop.permute.xlu0 %994
    %s997 = scalar_lea.vmem [#allocation11], %s893
    %998 = vst.msk [vmem:[%s997] sm:$0xff] %vm101, %v995
    %s999 = scalar_select %p81, 0, 7
    %s1000 = smul.u32 %s999, 8
    %s1001 = scalar_lea.vmem [#allocation2], %s1000
    %v1002 = vld [vmem:[%s1001] sm:$0xff]
    %v1003 = vsel %vm101, %v995, 0
    %1005 = vmatprep.subr.mxu0 0.0
    %1006 = vmatpush1.msra.mxu0 0.0
    %1007 = vmatprep.subr.mxu0 0.0
    %1008 = vmatpush1.msra.mxu0 0.0
    %1009 = vmatprep.subr.mxu0 0.0
    %1010 = vmatpush1.msra.mxu0 0.0
    %1011 = vmatprep.subr.mxu0 0.0
    %1012 = vmatpush1.msra.mxu0 0.0
    %1013 = vmatprep.subr.mxu0 0.0
    %1014 = vmatpush1.msra.mxu0 0.0
    %1015 = vmatprep.subr.mxu0 0.0
    %1016 = vmatpush1.msra.mxu0 0.0
    %1017 = vmatprep.subr.mxu0 0.0
    %1018 = vmatpush1.msra.mxu0 0.0
    %1019 = vmatprep.subr.mxu0 0.0
    %1020 = vmatpush1.msra.mxu0 0.0
    %1021 = vmatprep.subr.mxu0 0.0
    %1022 = vmatpush1.msra.mxu0 0.0
    %1023 = vmatprep.subr.mxu0 0.0
    %1024 = vmatpush1.msra.mxu0 0.0
    %1025 = vmatprep.subr.mxu0 0.0
    %1026 = vmatpush1.msra.mxu0 0.0
    %1027 = vmatprep.subr.mxu0 0.0
    %1028 = vmatpush1.msra.mxu0 0.0
    %1029 = vmatprep.subr.mxu0 0.0
    %1030 = vmatpush1.msra.mxu0 %v242
    %1031 = vmatprep.subr.mxu0 0.0
    %1032 = vmatpush1.msra.mxu0 %v241
    %1033 = vmatprep.subr.mxu0 0.0
    %1034 = vmatpush1.msra.mxu0 %v240
    %1035 = vmatprep.subr.mxu0 0.0
    %1036 = vmatpush1.msra.mxu0 %v239
    %1037 = vmatprep.subr.mxu0 0.0
    %1038 = vmatpush2.msra.mxu0 0.0
    %1039 = vmatprep.subr.mxu0 0.0
    %1040 = vmatpush2.msra.mxu0 0.0
    %1041 = vmatprep.subr.mxu0 0.0
    %1042 = vmatpush2.msra.mxu0 0.0
    %1043 = vmatprep.subr.mxu0 0.0
    %1044 = vmatpush2.msra.mxu0 0.0
    %1045 = vmatprep.subr.mxu0 0.0
    %1046 = vmatpush2.msra.mxu0 0.0
    %1047 = vmatprep.subr.mxu0 0.0
    %1048 = vmatpush2.msra.mxu0 0.0
    %1049 = vmatprep.subr.mxu0 0.0
    %1050 = vmatpush2.msra.mxu0 0.0
    %1051 = vmatprep.subr.mxu0 0.0
    %1052 = vmatpush2.msra.mxu0 0.0
    %1053 = vmatprep.subr.mxu0 0.0
    %1054 = vmatpush2.msra.mxu0 0.0
    %1055 = vmatprep.subr.mxu0 0.0
    %1056 = vmatpush2.msra.mxu0 0.0
    %1057 = vmatprep.subr.mxu0 0.0
    %1058 = vmatpush2.msra.mxu0 0.0
    %1059 = vmatprep.subr.mxu0 0.0
    %1060 = vmatpush2.msra.mxu0 0.0
    %1061 = vmatprep.subr.mxu0 0.0
    %1062 = vmatpush2.msra.mxu0 0.0
    %1063 = vmatprep.subr.mxu0 0.0
    %1064 = vmatpush2.msra.mxu0 0.0
    %1065 = vmatprep.subr.mxu0 0.0
    %1066 = vmatpush2.msra.mxu0 0.0
    %1067 = vmatprep.subr.mxu0 0.0
    %1068 = vmatpush2.msra.mxu0 0.0
    %1069 = vmatprep.mubr.f32.mxu0 0.0
    %1070 = vmatmul.mubr.f32.gmra.mxu0 %v1003
    %v1071 = vpop.f32.mrf.mxu0
    %v1072 = vadd.f32 0.0, %v1071
    %v1073 = vpop.f32.mrf.mxu0
    %1074 = vdwg.mxu0
    %v1075 = vadd.f32 %v1002, %v1072
    %v1076 = vxor.u32 %v1075, 2147483648
    %v1077 = vmul.f32 %v1076, 1.442695
    %v1078 = vpow.pop %v1077
    %v1079 = vadd.f32 %v1078, 1.0
    %v1080 = vrcp.pop %v1079
    %v1081 = vmul.f32 1.0, %v1080
    %v1082 = vtanh.pop %v1075
    %v1083 = vmul.f32 %v1081, %v986
    %1085 = vrot.lane.b32.xlu0 %v1082, 32
    %v1086 = vpop.permute.xlu0 %1085
    %v1088 = vmul.f32 %v1081, %v1086
    %1090 = vrot.lane.b32.xlu0 %v1088, 32
    %v1091 = vpop.permute.xlu0 %1090
    %v1093 = vadd.f32 %v1083, %v1091
    %v1094 = vtanh.pop %v1093
    %1096 = vrot.lane.b32.xlu0 %v1094, 32
    %v1097 = vpop.permute.xlu0 %1096
    %v1099 = vmul.f32 %v1081, %v1097
    %1101 = vrot.lane.b32.xlu0 %v1099, 64
    %v1102 = vpop.permute.xlu0 %1101
    %s1104 = scalar_lea.vmem [#allocation11], %s1000
    %1105 = vst.msk [vmem:[%s1104] sm:$0xff] %vm101, %v1102
    %1106 = vst.msk [vmem:[#allocation12] sm:$0xff] %vm101, %v1102
    %1108 = vrot.lane.b32.xlu0 %v1093, 96
    %v1109 = vpop.permute.xlu0 %1108
    %1111 = vst.msk [vmem:[#allocation14] sm:$0xff] %vm101, %v1109
    // Predicated region
    $region42: #{tpu_custom_call.1} parent=1 // pred_check
      _
    $region43: #{tpu_custom_call.1} parent=1 // pred_check_branch
      %1113 = sbr.rel (0) target = $region45
    $region44: #{tpu_custom_call.1} parent=1 // pred_region
      %s1115 = ssub.s32 1024, 1024
      %1116 = vsyncadd [#allocation5], %s1115
      %s1117 = sshll.u32 [#allocation11], 4
      %s1118 = int_to_ptr.vmem [resolvable:$true] %s1117
      %1123 = dma.vmem_to_hbm [thread:$0]  %s1118, 1024, %s6, [#allocation5], 128, 128, 8
    $region45: #{tpu_custom_call.1} parent=1 // pred_fallthru
      _
    // Predicated region
    $region46: #{tpu_custom_call.1} parent=1 // pred_check
      _
    $region47: #{tpu_custom_call.1} parent=1 // pred_check_branch
      %1125 = sbr.rel (0) target = $region49
    $region48: #{tpu_custom_call.1} parent=1 // pred_region
      %s1127 = ssub.s32 128, 128
      %1128 = vsyncadd [#allocation13], %s1127
      %s1130 = sshll.u32 [#allocation12], 4
      %s1131 = int_to_ptr.vmem [resolvable:$true] %s1130
      %1133 = dma.vmem_to_hbm [thread:$0]  %s1131, 128, %s7, [#allocation13]
    $region49: #{tpu_custom_call.1} parent=1 // pred_fallthru
      _
    // Predicated region
    $region50: #{tpu_custom_call.1} parent=1 // pred_check
      _
    $region51: #{tpu_custom_call.1} parent=1 // pred_check_branch
      %1135 = sbr.rel (0) target = $region53
    $region52: #{tpu_custom_call.1} parent=1 // pred_region
      %s1137 = ssub.s32 128, 128
      %1138 = vsyncadd [#allocation13], %s1137
      %s1140 = sshll.u32 [#allocation14], 4
      %s1141 = int_to_ptr.vmem [resolvable:$true] %s1140
      %1143 = dma.vmem_to_hbm [thread:$0]  %s1141, 128, %s8, [#allocation13]
    $region53: #{tpu_custom_call.1} parent=1 // pred_fallthru
      _
    // Predicated region
    $region54: #{tpu_custom_call.1} parent=1 // pred_check
      _
    $region55: #{tpu_custom_call.1} parent=1 // pred_check_branch
      %1145 = sbr.rel (0) target = $region57
    $region56: #{tpu_custom_call.1} parent=1 // pred_region
      %1146 = dma.done [#allocation5], 1024
    $region57: #{tpu_custom_call.1} parent=1 // pred_fallthru
      _
    // Predicated region
    $region58: #{tpu_custom_call.1} parent=1 // pred_check
      _
    $region59: #{tpu_custom_call.1} parent=1 // pred_check_branch
      %1148 = sbr.rel (0) target = $region61
    $region60: #{tpu_custom_call.1} parent=1 // pred_region
      %1149 = dma.done [#allocation13], 128
    $region61: #{tpu_custom_call.1} parent=1 // pred_fallthru
      _
    // Predicated region
    $region62: #{tpu_custom_call.1} parent=1 // pred_check
      _
    $region63: #{tpu_custom_call.1} parent=1 // pred_check_branch
      %1151 = sbr.rel (0) target = $region65
    $region64: #{tpu_custom_call.1} parent=1 // pred_region
      %1152 = dma.done [#allocation13], 128
    $region65: #{tpu_custom_call.1} parent=1 // pred_fallthru
      _
    %1153 = vsyncpa [#allocation4], 1
    %1154 = vsyncpa [#allocation7], 1
    %1155 = vsyncpa [#allocation10], 1
    %1156 = vsyncpa [#allocation5], 1
    %1157 = vsyncpa [#allocation13], 1

</llo_original>
